<compile_context>
chip_gen: v7x
topology: tpu7x:2x2x1
jax: 0.10.0
libtpu: 0.0.40
codegen_flags: <defaults>
</compile_context>

<pallas_src>
import functools
import math

import jax
import jax.numpy as jnp
from jax import lax
from jax.experimental import pallas as pl
from jax.experimental.pallas import tpu as pltpu


_COMPUTE_DTYPE = jnp.bfloat16   # MXU input dtype; accumulation / softmax stay f32


# ------------------------------ fused kernel --------------------------------

def _attend(q, k, v, scale):
    """Single-head softmax attention.  q, k, v: (T, D) f32 -> (T, D) f32."""
    # Scale folded into q: equivalent to scaling the scores (bias is part of q in the
    # reference as well), and touches T*D elements instead of T*T.
    qs = (q * scale).astype(_COMPUTE_DTYPE)
    kb = k.astype(_COMPUTE_DTYPE)
    s = lax.dot_general(qs, kb, (((1,), (1,)), ((), ())),
                        preferred_element_type=jnp.float32)             # (T, T)
    s = s - jnp.max(s, axis=-1, keepdims=True)
    e = jnp.exp(s)
    denom = jnp.sum(e, axis=-1, keepdims=True)
    p = e * pl.reciprocal(denom, approx=False)     # exact; approx=True for max perf
    return jnp.dot(p.astype(_COMPUTE_DTYPE), v.astype(_COMPUTE_DTYPE),
                   preferred_element_type=jnp.float32)                  # (T, D)


def _fused_mha_kernel(x1_ref, x2_ref, x3_ref, x_ref,        # (1, T, C) activation blocks
                      wsel_ref, bsel_ref,                    # (3, C, D), (3, 1, D) selected-head c_attn
                      wx_ref, bx_ref,                        # (C, 3*nx*D), (1, 3*nx*D) fused x-stream c_attn
                      wp_ref, bp_ref,                        # (C, C), (1, C) c_proj^T + bias
                      o_ref,                                 # (1, T, C) output (doubles as y staging)
                      *, head_dim, sel_positions, x_positions):
    D = head_dim
    nx = len(x_positions)
    scale = 1.0 / math.sqrt(D)

    # --- assembled head(s) taken from the (x1, x2, x3) streams (head HEAD_IDX) ------
    # Normally exactly one such position; computed once, written to each column slot.
    if sel_positions:
        q = jnp.dot(x1_ref[0].astype(_COMPUTE_DTYPE), wsel_ref[0],
                    preferred_element_type=jnp.float32) + bsel_ref[0]
        k = jnp.dot(x2_ref[0].astype(_COMPUTE_DTYPE), wsel_ref[1],
                    preferred_element_type=jnp.float32) + bsel_ref[1]
        v = jnp.dot(x3_ref[0].astype(_COMPUTE_DTYPE), wsel_ref[2],
                    preferred_element_type=jnp.float32) + bsel_ref[2]
        y_sel = _attend(q, k, v, scale)
        for p in sel_positions:
            o_ref[0, :, p * D:(p + 1) * D] = y_sel.astype(o_ref.dtype)

    # --- assembled heads taken from the x stream: ONE fused wide qkv projection -----
    if nx:
        qkv = jnp.dot(x_ref[0].astype(_COMPUTE_DTYPE), wx_ref[...],
                      preferred_element_type=jnp.float32) + bx_ref[...]  # (T, 3*nx*D)
        # Fully-unrolled static head loop (nx is known at trace time) -> static slices.
        for j, p in enumerate(x_positions):
            q = qkv[:, j * D:(j + 1) * D]
            k = qkv[:, (nx + j) * D:(nx + j + 1) * D]
            v = qkv[:, (2 * nx + j) * D:(2 * nx + j + 1) * D]
            y = _attend(q, k, v, scale)
            o_ref[0, :, p * D:(p + 1) * D] = y.astype(o_ref.dtype)

    # --- single full-width c_proj matmul over the staged (T, C) head concat ---------
    # Every column of o_ref[0] was written above (sel_positions + x_positions cover all
    # assembled heads), so this read is fully initialized.
    y_all = o_ref[0].astype(_COMPUTE_DTYPE)
    out = jnp.dot(y_all, wp_ref[...], preferred_element_type=jnp.float32) + bp_ref[...]
    o_ref[0] = out.astype(o_ref.dtype)


# ----------------- hoisted (once-per-model) weight preparation --------------

def prepare_mha_params(params, n_head, head_idx, head_idxs, permutation,
                       compute_dtype=_COMPUTE_DTYPE):
    """Gather / permute / pre-transpose / cast the weights once (static metadata)."""
    caw = jnp.asarray(params["c_attn_w"])    # (3C, C)  torch nn.Linear (out, in)
    cab = jnp.asarray(params["c_attn_b"])    # (3C,)
    cpw = jnp.asarray(params["c_proj_w"])    # (C, C)
    cpb = jnp.asarray(params["c_proj_b"])    # (C,)

    C = caw.shape[1]
    H = int(n_head)
    D = C // H
    head_idx = int(head_idx)
    head_idxs = [int(h) for h in head_idxs]
    permutation = [int(p) for p in permutation]
    assert len(permutation) == H

    # Assembled head p reads concat position permutation[p]:
    #   permutation[p] == 0 -> head `head_idx`, q/k/v from (x1, x2, x3)
    #   permutation[p]  > 0 -> head head_idxs[permutation[p]-1], q/k/v from x
    sel_positions = tuple(p for p in range(H) if permutation[p] == 0)
    x_positions = tuple(p for p in range(H) if permutation[p] != 0)
    assert sel_positions and x_positions, "degenerate permutation not supported"

    wq, wk, wv = caw[:C], caw[C:2 * C], caw[2 * C:]
    bq, bk, bv = cab[:C], cab[C:2 * C], cab[2 * C:]

    def wslab(w, h):             # head-h slab with the contraction dim leading: (C, D)
        return w[h * D:(h + 1) * D, :].T

    def bslab(b, h):
        return b[h * D:(h + 1) * D]

    # Selected head (q from x1, k from x2, v from x3).
    wsel = jnp.stack([wslab(wq, head_idx), wslab(wk, head_idx), wslab(wv, head_idx)])
    bsel = jnp.stack([bslab(bq, head_idx), bslab(bk, head_idx),
                      bslab(bv, head_idx)])[:, None, :]

    # x-stream heads fused into one (C, 3*nx*D) slab: [Q block | K block | V block],
    # column block j corresponds to assembled position x_positions[j].
    src_heads = [head_idxs[permutation[p] - 1] for p in x_positions]
    wx = jnp.concatenate([wslab(wq, h) for h in src_heads]
                         + [wslab(wk, h) for h in src_heads]
                         + [wslab(wv, h) for h in src_heads], axis=1)
    bx = jnp.concatenate([bslab(bq, h) for h in src_heads]
                         + [bslab(bk, h) for h in src_heads]
                         + [bslab(bv, h) for h in src_heads])[None, :]

    return {
        "wsel": wsel.astype(compute_dtype), "bsel": bsel.astype(jnp.float32),
        "wx": wx.astype(compute_dtype), "bx": bx.astype(jnp.float32),
        "wp": cpw.T.astype(compute_dtype), "bp": cpb[None, :].astype(jnp.float32),
        "head_dim": D, "n_head": H,
        "sel_positions": sel_positions, "x_positions": x_positions,
    }


# ----------------------------- CustomMHA forward ----------------------------

def custom_mha_forward(X, prepared):
    x1, x2, x3, x = X
    B, T, C = x1.shape
    D = prepared["head_dim"]

    kernel = functools.partial(
        _fused_mha_kernel,
        head_dim=D,
        sel_positions=prepared["sel_positions"],
        x_positions=prepared["x_positions"],
    )

    act_spec = pl.BlockSpec((1, T, C), lambda b: (b, 0, 0))

    def full_spec(arr):                       # whole (small) weight array resident in VMEM
        nd = arr.ndim
        return pl.BlockSpec(arr.shape, lambda b, _nd=nd: (0,) * _nd)

    weights = (prepared["wsel"], prepared["bsel"], prepared["wx"],
               prepared["bx"], prepared["wp"], prepared["bp"])

    return pl.pallas_call(
        kernel,
        out_shape=jax.ShapeDtypeStruct((B, T, C), x1.dtype),
        grid_spec=pltpu.PrefetchScalarGridSpec(
            num_scalar_prefetch=0,
            grid=(B,),                                    # batch only; heads unrolled in-kernel
            in_specs=[act_spec, act_spec, act_spec, act_spec]
                     + [full_spec(w) for w in weights],
            out_specs=pl.BlockSpec((1, T, C), lambda b: (b, 0, 0)),
        ),
        compiler_params=pltpu.CompilerParams(
            dimension_semantics=("parallel",),            # >=2 steps -> v7x megacore friendly
            vmem_limit_bytes=32 * 1024 * 1024,            # raise v5e's 16 MiB default scope
        ),
    )(x1, x2, x3, x, *weights)


# -------------------- pure-JAX reference (mirrors the torch code) -----------

def reference_forward(X, params, n_head, head_idx, head_idxs, permutation):
    x1, x2, x3, x = X
    B, T, C = x1.shape
    D = C // n_head
    caw, cab = params["c_attn_w"], params["c_attn_b"]
    cpw, cpb = params["c_proj_w"], params["c_proj_b"]

    def lin(z, w, b):
        return jnp.einsum("btc,oc->bto", z, w) + b

    qkv1, qkv2, qkv3, qkvt = (lin(z, caw, cab) for z in (x1, x2, x3, x))
    q, k, v = qkv1[..., :C], qkv2[..., C:2 * C], qkv3[..., 2 * C:]
    qt, kt, vt = qkvt[..., :C], qkvt[..., C:2 * C], qkvt[..., 2 * C:]

    def to_heads(z):
        return z.reshape(B, T, n_head, D).transpose(0, 2, 1, 3)

    q, k, v, qt, kt, vt = map(to_heads, (q, k, v, qt, kt, vt))
    head_idxs = jnp.asarray(head_idxs)
    permutation = jnp.asarray(permutation)
    kf = jnp.concatenate([k[:, head_idx:head_idx + 1], kt[:, head_idxs]], axis=1)[:, permutation]
    qf = jnp.concatenate([q[:, head_idx:head_idx + 1], qt[:, head_idxs]], axis=1)[:, permutation]
    vf = jnp.concatenate([v[:, head_idx:head_idx + 1], vt[:, head_idxs]], axis=1)[:, permutation]
    att = jnp.einsum("bhqd,bhkd->bhqk", qf, kf) / math.sqrt(D)
    att = jax.nn.softmax(att, axis=-1)
    y = jnp.einsum("bhqk,bhkd->bhqd", att, vf)
    y = y.transpose(0, 2, 1, 3).reshape(B, T, C)
    return lin(y, cpw, cpb)


# ---------------------------------- main -------------------------------------

if __name__ == "__main__":
    B, T, C, H = 2, 8, 32, 4          # batch, seq, embed, heads -> head_dim 8
    HEAD_IDX = 1                      # globals in the torch file are None; pick deterministic values
    HEAD_IDXS = [0, 2, 3]             # n_head - 1 heads taken from the "full" stream
    PERMUTATION = [2, 0, 3, 1]        # permutation of the n_head assembled heads

    key = jax.random.PRNGKey(0)
    k1, k2, k3, k4, kw1, kb1, kw2, kb2 = jax.random.split(key, 8)

    x1 = jax.random.normal(k1, (B, T, C), dtype=jnp.float32)
    x2 = jax.random.normal(k2, (B, T, C), dtype=jnp.float32)
    x3 = jax.random.normal(k3, (B, T, C), dtype=jnp.float32)
    x = jax.random.normal(k4, (B, T, C), dtype=jnp.float32)

    params = {
        "c_attn_w": jax.random.normal(kw1, (3 * C, C), dtype=jnp.float32) * 0.05,
        "c_attn_b": jax.random.normal(kb1, (3 * C,), dtype=jnp.float32) * 0.05,
        "c_proj_w": jax.random.normal(kw2, (C, C), dtype=jnp.float32) * 0.05,
        "c_proj_b": jax.random.normal(kb2, (C,), dtype=jnp.float32) * 0.05,
    }

    prepared = prepare_mha_params(params, H, HEAD_IDX, HEAD_IDXS, PERMUTATION)

    X = (x1, x2, x3, x)
    out = custom_mha_forward(X, prepared)
    out = jax.block_until_ready(out)

    ref = reference_forward(X, params, H, HEAD_IDX, HEAD_IDXS, PERMUTATION)
    assert out.shape == (B, T, C)
    # bf16 MXU inputs (per perf review) -> tolerance loosened vs the all-f32 reference;
    # accumulation (preferred_element_type) and softmax remain f32.
    assert jnp.allclose(out, ref, atol=2e-2, rtol=2e-2), "mismatch vs pure-JAX reference"

    print("KERNEL_OK")
</pallas_src>

<mosaic_0001>
module attributes {stable_mosaic.version = 11 : i64} {
  func.func @_fused_mha_kernel(%arg0: i32, %arg1: memref<1x8x32xf32, #tpu.memory_space<vmem>>, %arg2: memref<1x8x32xf32, #tpu.memory_space<vmem>>, %arg3: memref<1x8x32xf32, #tpu.memory_space<vmem>>, %arg4: memref<1x8x32xf32, #tpu.memory_space<vmem>>, %arg5: memref<3x32x8xbf16, #tpu.memory_space<vmem>>, %arg6: memref<3x1x8xf32, #tpu.memory_space<vmem>>, %arg7: memref<32x72xbf16, #tpu.memory_space<vmem>>, %arg8: memref<1x72xf32, #tpu.memory_space<vmem>>, %arg9: memref<32x32xbf16, #tpu.memory_space<vmem>>, %arg10: memref<1x32xf32, #tpu.memory_space<vmem>>, %arg11: memref<1x8x32xf32, #tpu.memory_space<vmem>>) attributes {dimension_semantics = [#tpu.dimension_semantics<parallel>], iteration_bounds = array<i64: 2>, scalar_prefetch = 0 : i64, scratch_operands = 0 : i64, tpu.core_type = #tpu.core_type<tc>, window_params = [{transform_indices = @transform_0, window_bounds = array<i64: 1, 8, 32>}, {transform_indices = @transform_1, window_bounds = array<i64: 1, 8, 32>}, {transform_indices = @transform_2, window_bounds = array<i64: 1, 8, 32>}, {transform_indices = @transform_3, window_bounds = array<i64: 1, 8, 32>}, {pipeline_mode = #tpu.pipeline_mode<synchronous>, transform_indices = @transform_4, window_bounds = array<i64: 3, 32, 8>}, {pipeline_mode = #tpu.pipeline_mode<synchronous>, transform_indices = @transform_5, window_bounds = array<i64: 3, 1, 8>}, {pipeline_mode = #tpu.pipeline_mode<synchronous>, transform_indices = @transform_6, window_bounds = array<i64: 32, 72>}, {pipeline_mode = #tpu.pipeline_mode<synchronous>, transform_indices = @transform_7, window_bounds = array<i64: 1, 72>}, {pipeline_mode = #tpu.pipeline_mode<synchronous>, transform_indices = @transform_8, window_bounds = array<i64: 32, 32>}, {pipeline_mode = #tpu.pipeline_mode<synchronous>, transform_indices = @transform_9, window_bounds = array<i64: 1, 32>}, {transform_indices = @transform_10, window_bounds = array<i64: 1, 8, 32>}]} {
    %c0 = arith.constant 0 : index
    %c0_0 = arith.constant 0 : index
    %c0_1 = arith.constant 0 : index
    %0 = vector.load %arg1[%c0, %c0_0, %c0_1] : memref<1x8x32xf32, #tpu.memory_space<vmem>>, vector<1x8x32xf32>
    %1 = vector.shape_cast %0 : vector<1x8x32xf32> to vector<8x32xf32>
    %2 = arith.truncf %1 : vector<8x32xf32> to vector<8x32xbf16>
    %c0_2 = arith.constant 0 : index
    %c0_3 = arith.constant 0 : index
    %c0_4 = arith.constant 0 : index
    %3 = vector.load %arg5[%c0_2, %c0_3, %c0_4] : memref<3x32x8xbf16, #tpu.memory_space<vmem>>, vector<1x32x8xbf16>
    %4 = vector.shape_cast %3 : vector<1x32x8xbf16> to vector<32x8xbf16>
    %cst = arith.constant dense<0.000000e+00> : vector<8x8xf32>
    %5 = tpu.matmul %2, %4, %cst {dimension_numbers = #tpu.dot_dimension_numbers<[1], [0], [0], [1], [0, 0, 1, 1], [], []>} : vector<8x32xbf16>, vector<32x8xbf16>, vector<8x8xf32> -> vector<8x8xf32>
    %c0_5 = arith.constant 0 : index
    %c0_6 = arith.constant 0 : index
    %c0_7 = arith.constant 0 : index
    %6 = vector.load %arg6[%c0_5, %c0_6, %c0_7] : memref<3x1x8xf32, #tpu.memory_space<vmem>>, vector<1x1x8xf32>
    %7 = vector.shape_cast %6 : vector<1x1x8xf32> to vector<1x8xf32>
    %8 = vector.broadcast %7 : vector<1x8xf32> to vector<8x8xf32>
    %9 = arith.addf %5, %8 : vector<8x8xf32>
    %c0_8 = arith.constant 0 : index
    %c0_9 = arith.constant 0 : index
    %c0_10 = arith.constant 0 : index
    %10 = vector.load %arg2[%c0_8, %c0_9, %c0_10] : memref<1x8x32xf32, #tpu.memory_space<vmem>>, vector<1x8x32xf32>
    %11 = vector.shape_cast %10 : vector<1x8x32xf32> to vector<8x32xf32>
    %12 = arith.truncf %11 : vector<8x32xf32> to vector<8x32xbf16>
    %c1 = arith.constant 1 : index
    %c0_11 = arith.constant 0 : index
    %c0_12 = arith.constant 0 : index
    %13 = vector.load %arg5[%c1, %c0_11, %c0_12] : memref<3x32x8xbf16, #tpu.memory_space<vmem>>, vector<1x32x8xbf16>
    %14 = vector.shape_cast %13 : vector<1x32x8xbf16> to vector<32x8xbf16>
    %cst_13 = arith.constant dense<0.000000e+00> : vector<8x8xf32>
    %15 = tpu.matmul %12, %14, %cst_13 {dimension_numbers = #tpu.dot_dimension_numbers<[1], [0], [0], [1], [0, 0, 1, 1], [], []>} : vector<8x32xbf16>, vector<32x8xbf16>, vector<8x8xf32> -> vector<8x8xf32>
    %c1_14 = arith.constant 1 : index
    %c0_15 = arith.constant 0 : index
    %c0_16 = arith.constant 0 : index
    %16 = vector.load %arg6[%c1_14, %c0_15, %c0_16] : memref<3x1x8xf32, #tpu.memory_space<vmem>>, vector<1x1x8xf32>
    %17 = vector.shape_cast %16 : vector<1x1x8xf32> to vector<1x8xf32>
    %18 = vector.broadcast %17 : vector<1x8xf32> to vector<8x8xf32>
    %19 = arith.addf %15, %18 : vector<8x8xf32>
    %c0_17 = arith.constant 0 : index
    %c0_18 = arith.constant 0 : index
    %c0_19 = arith.constant 0 : index
    %20 = vector.load %arg3[%c0_17, %c0_18, %c0_19] : memref<1x8x32xf32, #tpu.memory_space<vmem>>, vector<1x8x32xf32>
    %21 = vector.shape_cast %20 : vector<1x8x32xf32> to vector<8x32xf32>
    %22 = arith.truncf %21 : vector<8x32xf32> to vector<8x32xbf16>
    %c2 = arith.constant 2 : index
    %c0_20 = arith.constant 0 : index
    %c0_21 = arith.constant 0 : index
    %23 = vector.load %arg5[%c2, %c0_20, %c0_21] : memref<3x32x8xbf16, #tpu.memory_space<vmem>>, vector<1x32x8xbf16>
    %24 = vector.shape_cast %23 : vector<1x32x8xbf16> to vector<32x8xbf16>
    %cst_22 = arith.constant dense<0.000000e+00> : vector<8x8xf32>
    %25 = tpu.matmul %22, %24, %cst_22 {dimension_numbers = #tpu.dot_dimension_numbers<[1], [0], [0], [1], [0, 0, 1, 1], [], []>} : vector<8x32xbf16>, vector<32x8xbf16>, vector<8x8xf32> -> vector<8x8xf32>
    %c2_23 = arith.constant 2 : index
    %c0_24 = arith.constant 0 : index
    %c0_25 = arith.constant 0 : index
    %26 = vector.load %arg6[%c2_23, %c0_24, %c0_25] : memref<3x1x8xf32, #tpu.memory_space<vmem>>, vector<1x1x8xf32>
    %27 = vector.shape_cast %26 : vector<1x1x8xf32> to vector<1x8xf32>
    %28 = vector.broadcast %27 : vector<1x8xf32> to vector<8x8xf32>
    %29 = arith.addf %25, %28 : vector<8x8xf32>
    %cst_26 = arith.constant 0.353553385 : f32
    %30 = vector.broadcast %cst_26 : f32 to vector<8x8xf32>
    %31 = arith.mulf %9, %30 : vector<8x8xf32>
    %32 = arith.truncf %31 : vector<8x8xf32> to vector<8x8xbf16>
    %33 = arith.truncf %19 : vector<8x8xf32> to vector<8x8xbf16>
    %cst_27 = arith.constant dense<0.000000e+00> : vector<8x8xf32>
    %34 = tpu.matmul %32, %33, %cst_27 {dimension_numbers = #tpu.dot_dimension_numbers<[1], [1], [0], [0], [0, 0, 1, 0], [], []>} : vector<8x8xbf16>, vector<8x8xbf16>, vector<8x8xf32> -> vector<8x8xf32>
    %cst_28 = arith.constant dense<0xFF800000> : vector<8xf32>
    %35 = vector.multi_reduction <maximumf>, %34, %cst_28 [1] : vector<8x8xf32> to vector<8xf32>
    %36 = vector.shape_cast %35 : vector<8xf32> to vector<8x1xf32>
    %37 = vector.broadcast %36 : vector<8x1xf32> to vector<8x8xf32>
    %38 = arith.subf %34, %37 : vector<8x8xf32>
    %39 = math.exp %38 : vector<8x8xf32>
    %cst_29 = arith.constant dense<0.000000e+00> : vector<8xf32>
    %40 = vector.multi_reduction <add>, %39, %cst_29 [1] : vector<8x8xf32> to vector<8xf32>
    %41 = vector.shape_cast %40 : vector<8xf32> to vector<8x1xf32>
    %42 = tpu.reciprocal %41 : vector<8x1xf32> -> vector<8x1xf32>
    %43 = vector.broadcast %42 : vector<8x1xf32> to vector<8x8xf32>
    %44 = arith.mulf %39, %43 : vector<8x8xf32>
    %45 = arith.truncf %44 : vector<8x8xf32> to vector<8x8xbf16>
    %46 = arith.truncf %29 : vector<8x8xf32> to vector<8x8xbf16>
    %cst_30 = arith.constant dense<0.000000e+00> : vector<8x8xf32>
    %47 = tpu.matmul %45, %46, %cst_30 {dimension_numbers = #tpu.dot_dimension_numbers<[1], [0], [0], [1], [0, 0, 1, 1], [], []>} : vector<8x8xbf16>, vector<8x8xbf16>, vector<8x8xf32> -> vector<8x8xf32>
    %c0_31 = arith.constant 0 : index
    %c0_32 = arith.constant 0 : index
    %c8 = arith.constant 8 : index
    %48 = vector.load %arg11[%c0_31, %c0_32, %c8] : memref<1x8x32xf32, #tpu.memory_space<vmem>>, vector<1x8x8xf32>
    %49 = vector.shape_cast %48 : vector<1x8x8xf32> to vector<8x8xf32>
    %50 = vector.shape_cast %47 : vector<8x8xf32> to vector<1x8x8xf32>
    tpu.vector_store %arg11[%c0_31, %c0_32, %c8], %50 {strides = array<i32>} : memref<1x8x32xf32, #tpu.memory_space<vmem>>, vector<1x8x8xf32>,
    %c0_33 = arith.constant 0 : index
    %c0_34 = arith.constant 0 : index
    %c0_35 = arith.constant 0 : index
    %51 = vector.load %arg4[%c0_33, %c0_34, %c0_35] : memref<1x8x32xf32, #tpu.memory_space<vmem>>, vector<1x8x32xf32>
    %52 = vector.shape_cast %51 : vector<1x8x32xf32> to vector<8x32xf32>
    %53 = arith.truncf %52 : vector<8x32xf32> to vector<8x32xbf16>
    %c0_36 = arith.constant 0 : index
    %c0_37 = arith.constant 0 : index
    %54 = vector.load %arg7[%c0_36, %c0_37] : memref<32x72xbf16, #tpu.memory_space<vmem>>, vector<32x72xbf16>
    %cst_38 = arith.constant dense<0.000000e+00> : vector<8x72xf32>
    %55 = tpu.matmul %53, %54, %cst_38 {dimension_numbers = #tpu.dot_dimension_numbers<[1], [0], [0], [1], [0, 0, 1, 1], [], []>} : vector<8x32xbf16>, vector<32x72xbf16>, vector<8x72xf32> -> vector<8x72xf32>
    %c0_39 = arith.constant 0 : index
    %c0_40 = arith.constant 0 : index
    %56 = vector.load %arg8[%c0_39, %c0_40] : memref<1x72xf32, #tpu.memory_space<vmem>>, vector<1x72xf32>
    %57 = vector.broadcast %56 : vector<1x72xf32> to vector<8x72xf32>
    %58 = arith.addf %55, %57 : vector<8x72xf32>
    %59 = vector.extract_strided_slice %58 {offsets = [0, 0], sizes = [8, 8], strides = [1, 1]} : vector<8x72xf32> to vector<8x8xf32>
    %60 = vector.extract_strided_slice %58 {offsets = [0, 24], sizes = [8, 8], strides = [1, 1]} : vector<8x72xf32> to vector<8x8xf32>
    %61 = vector.extract_strided_slice %58 {offsets = [0, 48], sizes = [8, 8], strides = [1, 1]} : vector<8x72xf32> to vector<8x8xf32>
    %cst_41 = arith.constant 0.353553385 : f32
    %62 = vector.broadcast %cst_41 : f32 to vector<8x8xf32>
    %63 = arith.mulf %59, %62 : vector<8x8xf32>
    %64 = arith.truncf %63 : vector<8x8xf32> to vector<8x8xbf16>
    %65 = arith.truncf %60 : vector<8x8xf32> to vector<8x8xbf16>
    %cst_42 = arith.constant dense<0.000000e+00> : vector<8x8xf32>
    %66 = tpu.matmul %64, %65, %cst_42 {dimension_numbers = #tpu.dot_dimension_numbers<[1], [1], [0], [0], [0, 0, 1, 0], [], []>} : vector<8x8xbf16>, vector<8x8xbf16>, vector<8x8xf32> -> vector<8x8xf32>
    %cst_43 = arith.constant dense<0xFF800000> : vector<8xf32>
    %67 = vector.multi_reduction <maximumf>, %66, %cst_43 [1] : vector<8x8xf32> to vector<8xf32>
    %68 = vector.shape_cast %67 : vector<8xf32> to vector<8x1xf32>
    %69 = vector.broadcast %68 : vector<8x1xf32> to vector<8x8xf32>
    %70 = arith.subf %66, %69 : vector<8x8xf32>
    %71 = math.exp %70 : vector<8x8xf32>
    %cst_44 = arith.constant dense<0.000000e+00> : vector<8xf32>
    %72 = vector.multi_reduction <add>, %71, %cst_44 [1] : vector<8x8xf32> to vector<8xf32>
    %73 = vector.shape_cast %72 : vector<8xf32> to vector<8x1xf32>
    %74 = tpu.reciprocal %73 : vector<8x1xf32> -> vector<8x1xf32>
    %75 = vector.broadcast %74 : vector<8x1xf32> to vector<8x8xf32>
    %76 = arith.mulf %71, %75 : vector<8x8xf32>
    %77 = arith.truncf %76 : vector<8x8xf32> to vector<8x8xbf16>
    %78 = arith.truncf %61 : vector<8x8xf32> to vector<8x8xbf16>
    %cst_45 = arith.constant dense<0.000000e+00> : vector<8x8xf32>
    %79 = tpu.matmul %77, %78, %cst_45 {dimension_numbers = #tpu.dot_dimension_numbers<[1], [0], [0], [1], [0, 0, 1, 1], [], []>} : vector<8x8xbf16>, vector<8x8xbf16>, vector<8x8xf32> -> vector<8x8xf32>
    %c0_46 = arith.constant 0 : index
    %c0_47 = arith.constant 0 : index
    %c0_48 = arith.constant 0 : index
    %80 = vector.load %arg11[%c0_46, %c0_47, %c0_48] : memref<1x8x32xf32, #tpu.memory_space<vmem>>, vector<1x8x8xf32>
    %81 = vector.shape_cast %80 : vector<1x8x8xf32> to vector<8x8xf32>
    %82 = vector.shape_cast %79 : vector<8x8xf32> to vector<1x8x8xf32>
    tpu.vector_store %arg11[%c0_46, %c0_47, %c0_48], %82 {strides = array<i32>} : memref<1x8x32xf32, #tpu.memory_space<vmem>>, vector<1x8x8xf32>,
    %83 = vector.extract_strided_slice %58 {offsets = [0, 8], sizes = [8, 8], strides = [1, 1]} : vector<8x72xf32> to vector<8x8xf32>
    %84 = vector.extract_strided_slice %58 {offsets = [0, 32], sizes = [8, 8], strides = [1, 1]} : vector<8x72xf32> to vector<8x8xf32>
    %85 = vector.extract_strided_slice %58 {offsets = [0, 56], sizes = [8, 8], strides = [1, 1]} : vector<8x72xf32> to vector<8x8xf32>
    %cst_49 = arith.constant 0.353553385 : f32
    %86 = vector.broadcast %cst_49 : f32 to vector<8x8xf32>
    %87 = arith.mulf %83, %86 : vector<8x8xf32>
    %88 = arith.truncf %87 : vector<8x8xf32> to vector<8x8xbf16>
    %89 = arith.truncf %84 : vector<8x8xf32> to vector<8x8xbf16>
    %cst_50 = arith.constant dense<0.000000e+00> : vector<8x8xf32>
    %90 = tpu.matmul %88, %89, %cst_50 {dimension_numbers = #tpu.dot_dimension_numbers<[1], [1], [0], [0], [0, 0, 1, 0], [], []>} : vector<8x8xbf16>, vector<8x8xbf16>, vector<8x8xf32> -> vector<8x8xf32>
    %cst_51 = arith.constant dense<0xFF800000> : vector<8xf32>
    %91 = vector.multi_reduction <maximumf>, %90, %cst_51 [1] : vector<8x8xf32> to vector<8xf32>
    %92 = vector.shape_cast %91 : vector<8xf32> to vector<8x1xf32>
    %93 = vector.broadcast %92 : vector<8x1xf32> to vector<8x8xf32>
    %94 = arith.subf %90, %93 : vector<8x8xf32>
    %95 = math.exp %94 : vector<8x8xf32>
    %cst_52 = arith.constant dense<0.000000e+00> : vector<8xf32>
    %96 = vector.multi_reduction <add>, %95, %cst_52 [1] : vector<8x8xf32> to vector<8xf32>
    %97 = vector.shape_cast %96 : vector<8xf32> to vector<8x1xf32>
    %98 = tpu.reciprocal %97 : vector<8x1xf32> -> vector<8x1xf32>
    %99 = vector.broadcast %98 : vector<8x1xf32> to vector<8x8xf32>
    %100 = arith.mulf %95, %99 : vector<8x8xf32>
    %101 = arith.truncf %100 : vector<8x8xf32> to vector<8x8xbf16>
    %102 = arith.truncf %85 : vector<8x8xf32> to vector<8x8xbf16>
    %cst_53 = arith.constant dense<0.000000e+00> : vector<8x8xf32>
    %103 = tpu.matmul %101, %102, %cst_53 {dimension_numbers = #tpu.dot_dimension_numbers<[1], [0], [0], [1], [0, 0, 1, 1], [], []>} : vector<8x8xbf16>, vector<8x8xbf16>, vector<8x8xf32> -> vector<8x8xf32>
    %c0_54 = arith.constant 0 : index
    %c0_55 = arith.constant 0 : index
    %c16 = arith.constant 16 : index
    %104 = vector.load %arg11[%c0_54, %c0_55, %c16] : memref<1x8x32xf32, #tpu.memory_space<vmem>>, vector<1x8x8xf32>
    %105 = vector.shape_cast %104 : vector<1x8x8xf32> to vector<8x8xf32>
    %106 = vector.shape_cast %103 : vector<8x8xf32> to vector<1x8x8xf32>
    tpu.vector_store %arg11[%c0_54, %c0_55, %c16], %106 {strides = array<i32>} : memref<1x8x32xf32, #tpu.memory_space<vmem>>, vector<1x8x8xf32>,
    %107 = vector.extract_strided_slice %58 {offsets = [0, 16], sizes = [8, 8], strides = [1, 1]} : vector<8x72xf32> to vector<8x8xf32>
    %108 = vector.extract_strided_slice %58 {offsets = [0, 40], sizes = [8, 8], strides = [1, 1]} : vector<8x72xf32> to vector<8x8xf32>
    %109 = vector.extract_strided_slice %58 {offsets = [0, 64], sizes = [8, 8], strides = [1, 1]} : vector<8x72xf32> to vector<8x8xf32>
    %cst_56 = arith.constant 0.353553385 : f32
    %110 = vector.broadcast %cst_56 : f32 to vector<8x8xf32>
    %111 = arith.mulf %107, %110 : vector<8x8xf32>
    %112 = arith.truncf %111 : vector<8x8xf32> to vector<8x8xbf16>
    %113 = arith.truncf %108 : vector<8x8xf32> to vector<8x8xbf16>
    %cst_57 = arith.constant dense<0.000000e+00> : vector<8x8xf32>
    %114 = tpu.matmul %112, %113, %cst_57 {dimension_numbers = #tpu.dot_dimension_numbers<[1], [1], [0], [0], [0, 0, 1, 0], [], []>} : vector<8x8xbf16>, vector<8x8xbf16>, vector<8x8xf32> -> vector<8x8xf32>
    %cst_58 = arith.constant dense<0xFF800000> : vector<8xf32>
    %115 = vector.multi_reduction <maximumf>, %114, %cst_58 [1] : vector<8x8xf32> to vector<8xf32>
    %116 = vector.shape_cast %115 : vector<8xf32> to vector<8x1xf32>
    %117 = vector.broadcast %116 : vector<8x1xf32> to vector<8x8xf32>
    %118 = arith.subf %114, %117 : vector<8x8xf32>
    %119 = math.exp %118 : vector<8x8xf32>
    %cst_59 = arith.constant dense<0.000000e+00> : vector<8xf32>
    %120 = vector.multi_reduction <add>, %119, %cst_59 [1] : vector<8x8xf32> to vector<8xf32>
    %121 = vector.shape_cast %120 : vector<8xf32> to vector<8x1xf32>
    %122 = tpu.reciprocal %121 : vector<8x1xf32> -> vector<8x1xf32>
    %123 = vector.broadcast %122 : vector<8x1xf32> to vector<8x8xf32>
    %124 = arith.mulf %119, %123 : vector<8x8xf32>
    %125 = arith.truncf %124 : vector<8x8xf32> to vector<8x8xbf16>
    %126 = arith.truncf %109 : vector<8x8xf32> to vector<8x8xbf16>
    %cst_60 = arith.constant dense<0.000000e+00> : vector<8x8xf32>
    %127 = tpu.matmul %125, %126, %cst_60 {dimension_numbers = #tpu.dot_dimension_numbers<[1], [0], [0], [1], [0, 0, 1, 1], [], []>} : vector<8x8xbf16>, vector<8x8xbf16>, vector<8x8xf32> -> vector<8x8xf32>
    %c0_61 = arith.constant 0 : index
    %c0_62 = arith.constant 0 : index
    %c24 = arith.constant 24 : index
    %128 = vector.load %arg11[%c0_61, %c0_62, %c24] : memref<1x8x32xf32, #tpu.memory_space<vmem>>, vector<1x8x8xf32>
    %129 = vector.shape_cast %128 : vector<1x8x8xf32> to vector<8x8xf32>
    %130 = vector.shape_cast %127 : vector<8x8xf32> to vector<1x8x8xf32>
    tpu.vector_store %arg11[%c0_61, %c0_62, %c24], %130 {strides = array<i32>} : memref<1x8x32xf32, #tpu.memory_space<vmem>>, vector<1x8x8xf32>,
    %c0_63 = arith.constant 0 : index
    %c0_64 = arith.constant 0 : index
    %c0_65 = arith.constant 0 : index
    %131 = vector.load %arg11[%c0_63, %c0_64, %c0_65] : memref<1x8x32xf32, #tpu.memory_space<vmem>>, vector<1x8x32xf32>
    %132 = vector.shape_cast %131 : vector<1x8x32xf32> to vector<8x32xf32>
    %133 = arith.truncf %132 : vector<8x32xf32> to vector<8x32xbf16>
    %c0_66 = arith.constant 0 : index
    %c0_67 = arith.constant 0 : index
    %134 = vector.load %arg9[%c0_66, %c0_67] : memref<32x32xbf16, #tpu.memory_space<vmem>>, vector<32x32xbf16>
    %cst_68 = arith.constant dense<0.000000e+00> : vector<8x32xf32>
    %135 = tpu.matmul %133, %134, %cst_68 {dimension_numbers = #tpu.dot_dimension_numbers<[1], [0], [0], [1], [0, 0, 1, 1], [], []>} : vector<8x32xbf16>, vector<32x32xbf16>, vector<8x32xf32> -> vector<8x32xf32>
    %c0_69 = arith.constant 0 : index
    %c0_70 = arith.constant 0 : index
    %136 = vector.load %arg10[%c0_69, %c0_70] : memref<1x32xf32, #tpu.memory_space<vmem>>, vector<1x32xf32>
    %137 = vector.broadcast %136 : vector<1x32xf32> to vector<8x32xf32>
    %138 = arith.addf %135, %137 : vector<8x32xf32>
    %c0_71 = arith.constant 0 : index
    %c0_72 = arith.constant 0 : index
    %c0_73 = arith.constant 0 : index
    %139 = vector.load %arg11[%c0_71, %c0_72, %c0_73] : memref<1x8x32xf32, #tpu.memory_space<vmem>>, vector<1x8x32xf32>
    %140 = vector.shape_cast %139 : vector<1x8x32xf32> to vector<8x32xf32>
    %141 = vector.shape_cast %138 : vector<8x32xf32> to vector<1x8x32xf32>
    tpu.vector_store %arg11[%c0_71, %c0_72, %c0_73], %141 {strides = array<i32>} : memref<1x8x32xf32, #tpu.memory_space<vmem>>, vector<1x8x32xf32>,
    return
  }
  func.func @transform_0(%arg0: i32) -> (i32, i32, i32) {
    %c0_i32 = arith.constant 0 : i32
    %c0_i32_0 = arith.constant 0 : i32
    %c0_i32_1 = arith.constant 0 : i32
    return %arg0, %c0_i32, %c0_i32_0 : i32, i32, i32
  }
  func.func @transform_1(%arg0: i32) -> (i32, i32, i32) {
    %c0_i32 = arith.constant 0 : i32
    %c0_i32_0 = arith.constant 0 : i32
    %c0_i32_1 = arith.constant 0 : i32
    return %arg0, %c0_i32, %c0_i32_0 : i32, i32, i32
  }
  func.func @transform_2(%arg0: i32) -> (i32, i32, i32) {
    %c0_i32 = arith.constant 0 : i32
    %c0_i32_0 = arith.constant 0 : i32
    %c0_i32_1 = arith.constant 0 : i32
    return %arg0, %c0_i32, %c0_i32_0 : i32, i32, i32
  }
  func.func @transform_3(%arg0: i32) -> (i32, i32, i32) {
    %c0_i32 = arith.constant 0 : i32
    %c0_i32_0 = arith.constant 0 : i32
    %c0_i32_1 = arith.constant 0 : i32
    return %arg0, %c0_i32, %c0_i32_0 : i32, i32, i32
  }
  func.func @transform_4(%arg0: i32) -> (i32, i32, i32) {
    %c0_i32 = arith.constant 0 : i32
    %c0_i32_0 = arith.constant 0 : i32
    %c0_i32_1 = arith.constant 0 : i32
    %c0_i32_2 = arith.constant 0 : i32
    return %c0_i32, %c0_i32_0, %c0_i32_1 : i32, i32, i32
  }
  func.func @transform_5(%arg0: i32) -> (i32, i32, i32) {
    %c0_i32 = arith.constant 0 : i32
    %c0_i32_0 = arith.constant 0 : i32
    %c0_i32_1 = arith.constant 0 : i32
    %c0_i32_2 = arith.constant 0 : i32
    return %c0_i32, %c0_i32_0, %c0_i32_1 : i32, i32, i32
  }
  func.func @transform_6(%arg0: i32) -> (i32, i32) {
    %c0_i32 = arith.constant 0 : i32
    %c0_i32_0 = arith.constant 0 : i32
    %c0_i32_1 = arith.constant 0 : i32
    return %c0_i32, %c0_i32_0 : i32, i32
  }
  func.func @transform_7(%arg0: i32) -> (i32, i32) {
    %c0_i32 = arith.constant 0 : i32
    %c0_i32_0 = arith.constant 0 : i32
    %c0_i32_1 = arith.constant 0 : i32
    return %c0_i32, %c0_i32_0 : i32, i32
  }
  func.func @transform_8(%arg0: i32) -> (i32, i32) {
    %c0_i32 = arith.constant 0 : i32
    %c0_i32_0 = arith.constant 0 : i32
    %c0_i32_1 = arith.constant 0 : i32
    return %c0_i32, %c0_i32_0 : i32, i32
  }
  func.func @transform_9(%arg0: i32) -> (i32, i32) {
    %c0_i32 = arith.constant 0 : i32
    %c0_i32_0 = arith.constant 0 : i32
    %c0_i32_1 = arith.constant 0 : i32
    return %c0_i32, %c0_i32_0 : i32, i32
  }
  func.func @transform_10(%arg0: i32) -> (i32, i32, i32) {
    %c0_i32 = arith.constant 0 : i32
    %c0_i32_0 = arith.constant 0 : i32
    %c0_i32_1 = arith.constant 0 : i32
    return %arg0, %c0_i32, %c0_i32_0 : i32, i32, i32
  }
}

</mosaic_0001>

<llo_original>
// kernel: tpu_custom_call.1
$region0: #{tpu_custom_call.1}
  #allocation0 [shape = 'u32[]', space=smem, size = 0x4, offset = 0x4, fixed_abs, tag = 'smem constant byte address 0x4 - core index']
  #allocation1 [shape = 'u32[144,128]{1,0:T(1,128)}', space=vmem, size = 0x12000, scoped, tag = 'internal scratch']
  %s0 = inlined_call_operand.vmem [shape: f32[2,8,32], index: 0, kind: input, shape index: {}]
  %s1 = inlined_call_operand.vmem [shape: f32[2,8,32], index: 1, kind: input, shape index: {}]
  %s2 = inlined_call_operand.vmem [shape: f32[2,8,32], index: 2, kind: input, shape index: {}]
  %s3 = inlined_call_operand.vmem [shape: f32[2,8,32], index: 3, kind: input, shape index: {}]
  %s4 = inlined_call_operand.vmem [shape: bf16[3,32,8], index: 4, kind: input, shape index: {}]
  %s5 = inlined_call_operand.hbm [shape: f32[3,1,8], index: 5, kind: input, shape index: {}]
  %s6 = inlined_call_operand.vmem [shape: bf16[32,72], index: 6, kind: input, shape index: {}]
  %s7 = inlined_call_operand.vmem [shape: f32[1,72], index: 7, kind: input, shape index: {}]
  %s8 = inlined_call_operand.hbm [shape: bf16[32,32], index: 8, kind: input, shape index: {}]
  %s9 = inlined_call_operand.vmem [shape: f32[1,32], index: 9, kind: input, shape index: {}]
  %s10 = inlined_call_operand.hbm [shape: f32[2,8,32], index: 10, kind: output, shape index: {}]
  %s11 = sld [smem:[#allocation0]]
  $region81: #{tpu_custom_call.1} parent=0
    _
  %s13 = ssub.s32 1, %s11
  %s14 = scalar_select 0, %s13, %s11
  $region1: #{tpu_custom_call.1} parent=0
    #allocation2 [shape = 'u8[1536]{0}', space=vmem, size = 0x800, scoped, tag = 'input window, operand 5, single buffered']
    #allocation3 [shape = 's32[2]{0}', space=sflag, size = 0x8, scoped, tag = 'scoped memory for tpu_custom_call.1']
    #allocation4 [shape = 's32[2]{0}', space=sflag, size = 0x8, scoped, tag = 'scoped memory for tpu_custom_call.1']
    #allocation5 [shape = 'u8[8192]{0}', space=vmem, size = 0x2000, scoped, tag = 'input window, operand 8, single buffered']
    #allocation6 [shape = 's32[1]{0}', space=sflag, size = 0x4, scoped, tag = 'scoped memory for tpu_custom_call.1']
    #allocation7 [shape = 'u8[8192]{0}', space=vmem, size = 0x2000, scoped, tag = 'output window, operand 0']
    %15 = vsyncpa [#allocation3], 0
    %16 = vsyncpa [#allocation6], 0
    %17 = vsyncpa [#allocation4], 0
    %s18 = scalar_lea.sflag [#allocation4], 1
    %19 = vsyncpa %s18, 0
    loop: start=0, step=1, limit=4
    $region2: #{tpu_custom_call.1} parent=1 // loop_pre_header
      _
    $region3: #{tpu_custom_call.1} parent=1 // loop_header
      %s21 = sphi 0, %s25
      %p22 = scmp.ge.s32.totalorder %s21, 4
      %s31 = sphi 0, %s33
      %s34 = sphi 0, %s31
      %s35 = sphi 0, %s34
      %s51 = sphi 0, %s35
      %s57 = sphi 0, %s59
      %s60 = sphi 0, %s57
      %s61 = sphi 0, %s60
      %s77 = sphi 0, %s61
      %s83 = sphi 0, %s85
      %s86 = sphi 0, %s83
      %s87 = sphi 0, %s86
      %s103 = sphi 0, %s87
      %s109 = sphi 0, %s111
      %s112 = sphi 0, %s109
      %s113 = sphi 0, %s112
      %s129 = sphi 0, %s113
      %s133 = sphi 0, %s133
      %s135 = sphi 0, %s133
      %s136 = sphi 0, %s135
      %s150 = sphi 0, %s136
      %s154 = sphi 0, %s154
      %s156 = sphi 0, %s154
      %s157 = sphi 0, %s156
      %s171 = sphi 0, %s157
      %s175 = sphi 0, %s175
      %s177 = sphi 0, %s175
      %s178 = sphi 0, %s177
      %s192 = sphi 0, %s178
      %s196 = sphi 0, %s196
      %s198 = sphi 0, %s196
      %s199 = sphi 0, %s198
      %s213 = sphi 0, %s199
      %s217 = sphi 0, %s217
      %s219 = sphi 0, %s217
      %s220 = sphi 0, %s219
      %s234 = sphi 0, %s220
      %s238 = sphi 0, %s238
      %s240 = sphi 0, %s238
      %s241 = sphi 0, %s240
      %s255 = sphi 0, %s241
      %s261 = sphi 0, %s263
      %s264 = sphi 0, %s261
      %s265 = sphi 0, %s264
      %s281 = sphi 0, %s265
    $region4: #{tpu_custom_call.1} parent=1 // loop_header_branch
      %24 = sbr.rel (%p22) target = $region8
    $region5: #{tpu_custom_call.1} parent=1 // loop_body
      %s26 = ssub.s32 %s21, 1
      %s27 = ssub.s32 %s21, 2
      %s28 = sadd.s32 %s21, 1
      %s29 = ssub.s32 %s21, %s28
      %p30 = scmp.eq.s32.totalorder %s29, 0
      %s32 = sadd.s32 %s31, 1
      %s33 = scalar_select %p30, %s31, %s32
      %p36 = pneg %p30
      %p37 = scmp.eq.s32.totalorder %s21, 1
      %p38 = por %p36, %p37
      %p39 = scmp.ne.s32.totalorder %s31, %s34
      %p40 = scmp.eq.s32.totalorder %s21, 0
      %p41 = por %p39, %p40
      %p42 = scmp.ne.s32.totalorder %s31, %s34
      %p43 = scmp.eq.s32.totalorder %s26, 1
      %p44 = por %p42, %p43
      %p45 = scmp.ne.s32.totalorder %s34, %s35
      %p46 = scmp.eq.s32.totalorder %s26, 0
      %p47 = por %p45, %p46
      %p48 = scmp.ne.s32.totalorder %s34, %s35
      %p49 = scmp.eq.s32.totalorder %s27, 1
      %p50 = por %p48, %p49
      %p52 = scmp.ne.s32.totalorder %s35, %s51
      %p53 = scmp.eq.s32.totalorder %s27, 0
      %p54 = por %p52, %p53
      %s55 = ssub.s32 %s21, %s28
      %p56 = scmp.eq.s32.totalorder %s55, 0
      %s58 = sadd.s32 %s57, 1
      %s59 = scalar_select %p56, %s57, %s58
      %p62 = pneg %p56
      %p63 = scmp.eq.s32.totalorder %s21, 1
      %p64 = por %p62, %p63
      %p65 = scmp.ne.s32.totalorder %s57, %s60
      %p66 = scmp.eq.s32.totalorder %s21, 0
      %p67 = por %p65, %p66
      %p68 = scmp.ne.s32.totalorder %s57, %s60
      %p69 = scmp.eq.s32.totalorder %s26, 1
      %p70 = por %p68, %p69
      %p71 = scmp.ne.s32.totalorder %s60, %s61
      %p72 = scmp.eq.s32.totalorder %s26, 0
      %p73 = por %p71, %p72
      %p74 = scmp.ne.s32.totalorder %s60, %s61
      %p75 = scmp.eq.s32.totalorder %s27, 1
      %p76 = por %p74, %p75
      %p78 = scmp.ne.s32.totalorder %s61, %s77
      %p79 = scmp.eq.s32.totalorder %s27, 0
      %p80 = por %p78, %p79
      %s81 = ssub.s32 %s21, %s28
      %p82 = scmp.eq.s32.totalorder %s81, 0
      %s84 = sadd.s32 %s83, 1
      %s85 = scalar_select %p82, %s83, %s84
      %p88 = pneg %p82
      %p89 = scmp.eq.s32.totalorder %s21, 1
      %p90 = por %p88, %p89
      %p91 = scmp.ne.s32.totalorder %s83, %s86
      %p92 = scmp.eq.s32.totalorder %s21, 0
      %p93 = por %p91, %p92
      %p94 = scmp.ne.s32.totalorder %s83, %s86
      %p95 = scmp.eq.s32.totalorder %s26, 1
      %p96 = por %p94, %p95
      %p97 = scmp.ne.s32.totalorder %s86, %s87
      %p98 = scmp.eq.s32.totalorder %s26, 0
      %p99 = por %p97, %p98
      %p100 = scmp.ne.s32.totalorder %s86, %s87
      %p101 = scmp.eq.s32.totalorder %s27, 1
      %p102 = por %p100, %p101
      %p104 = scmp.ne.s32.totalorder %s87, %s103
      %p105 = scmp.eq.s32.totalorder %s27, 0
      %p106 = por %p104, %p105
      %s107 = ssub.s32 %s21, %s28
      %p108 = scmp.eq.s32.totalorder %s107, 0
      %s110 = sadd.s32 %s109, 1
      %s111 = scalar_select %p108, %s109, %s110
      %p114 = pneg %p108
      %p115 = scmp.eq.s32.totalorder %s21, 1
      %p116 = por %p114, %p115
      %p117 = scmp.ne.s32.totalorder %s109, %s112
      %p118 = scmp.eq.s32.totalorder %s21, 0
      %p119 = por %p117, %p118
      %p120 = scmp.ne.s32.totalorder %s109, %s112
      %p121 = scmp.eq.s32.totalorder %s26, 1
      %p122 = por %p120, %p121
      %p123 = scmp.ne.s32.totalorder %s112, %s113
      %p124 = scmp.eq.s32.totalorder %s26, 0
      %p125 = por %p123, %p124
      %p126 = scmp.ne.s32.totalorder %s112, %s113
      %p127 = scmp.eq.s32.totalorder %s27, 1
      %p128 = por %p126, %p127
      %p130 = scmp.ne.s32.totalorder %s113, %s129
      %p131 = scmp.eq.s32.totalorder %s27, 0
      %p132 = por %p130, %p131
      %s134 = sadd.s32 %s133, 1
      %p137 = scmp.eq.s32.totalorder %s21, 1
      %p138 = scmp.ne.s32.totalorder %s133, %s135
      %p139 = scmp.eq.s32.totalorder %s21, 0
      %p140 = por %p138, %p139
      %p141 = scmp.ne.s32.totalorder %s133, %s135
      %p142 = scmp.eq.s32.totalorder %s26, 1
      %p143 = por %p141, %p142
      %p144 = scmp.ne.s32.totalorder %s135, %s136
      %p145 = scmp.eq.s32.totalorder %s26, 0
      %p146 = por %p144, %p145
      %p147 = scmp.ne.s32.totalorder %s135, %s136
      %p148 = scmp.eq.s32.totalorder %s27, 1
      %p149 = por %p147, %p148
      %p151 = scmp.ne.s32.totalorder %s136, %s150
      %p152 = scmp.eq.s32.totalorder %s27, 0
      %p153 = por %p151, %p152
      %s155 = sadd.s32 %s154, 1
      %p158 = scmp.eq.s32.totalorder %s21, 1
      %p159 = scmp.ne.s32.totalorder %s154, %s156
      %p160 = scmp.eq.s32.totalorder %s21, 0
      %p161 = por %p159, %p160
      %p162 = scmp.ne.s32.totalorder %s154, %s156
      %p163 = scmp.eq.s32.totalorder %s26, 1
      %p164 = por %p162, %p163
      %p165 = scmp.ne.s32.totalorder %s156, %s157
      %p166 = scmp.eq.s32.totalorder %s26, 0
      %p167 = por %p165, %p166
      %p168 = scmp.ne.s32.totalorder %s156, %s157
      %p169 = scmp.eq.s32.totalorder %s27, 1
      %p170 = por %p168, %p169
      %p172 = scmp.ne.s32.totalorder %s157, %s171
      %p173 = scmp.eq.s32.totalorder %s27, 0
      %p174 = por %p172, %p173
      %s176 = sadd.s32 %s175, 1
      %p179 = scmp.eq.s32.totalorder %s21, 1
      %p180 = scmp.ne.s32.totalorder %s175, %s177
      %p181 = scmp.eq.s32.totalorder %s21, 0
      %p182 = por %p180, %p181
      %p183 = scmp.ne.s32.totalorder %s175, %s177
      %p184 = scmp.eq.s32.totalorder %s26, 1
      %p185 = por %p183, %p184
      %p186 = scmp.ne.s32.totalorder %s177, %s178
      %p187 = scmp.eq.s32.totalorder %s26, 0
      %p188 = por %p186, %p187
      %p189 = scmp.ne.s32.totalorder %s177, %s178
      %p190 = scmp.eq.s32.totalorder %s27, 1
      %p191 = por %p189, %p190
      %p193 = scmp.ne.s32.totalorder %s178, %s192
      %p194 = scmp.eq.s32.totalorder %s27, 0
      %p195 = por %p193, %p194
      %s197 = sadd.s32 %s196, 1
      %p200 = scmp.eq.s32.totalorder %s21, 1
      %p201 = scmp.ne.s32.totalorder %s196, %s198
      %p202 = scmp.eq.s32.totalorder %s21, 0
      %p203 = por %p201, %p202
      %p204 = scmp.ne.s32.totalorder %s196, %s198
      %p205 = scmp.eq.s32.totalorder %s26, 1
      %p206 = por %p204, %p205
      %p207 = scmp.ne.s32.totalorder %s198, %s199
      %p208 = scmp.eq.s32.totalorder %s26, 0
      %p209 = por %p207, %p208
      %p210 = scmp.ne.s32.totalorder %s198, %s199
      %p211 = scmp.eq.s32.totalorder %s27, 1
      %p212 = por %p210, %p211
      %p214 = scmp.ne.s32.totalorder %s199, %s213
      %p215 = scmp.eq.s32.totalorder %s27, 0
      %p216 = por %p214, %p215
      %s218 = sadd.s32 %s217, 1
      %p221 = scmp.eq.s32.totalorder %s21, 1
      %p222 = scmp.ne.s32.totalorder %s217, %s219
      %p223 = scmp.eq.s32.totalorder %s21, 0
      %p224 = por %p222, %p223
      %p225 = scmp.ne.s32.totalorder %s217, %s219
      %p226 = scmp.eq.s32.totalorder %s26, 1
      %p227 = por %p225, %p226
      %p228 = scmp.ne.s32.totalorder %s219, %s220
      %p229 = scmp.eq.s32.totalorder %s26, 0
      %p230 = por %p228, %p229
      %p231 = scmp.ne.s32.totalorder %s219, %s220
      %p232 = scmp.eq.s32.totalorder %s27, 1
      %p233 = por %p231, %p232
      %p235 = scmp.ne.s32.totalorder %s220, %s234
      %p236 = scmp.eq.s32.totalorder %s27, 0
      %p237 = por %p235, %p236
      %s239 = sadd.s32 %s238, 1
      %p242 = scmp.eq.s32.totalorder %s21, 1
      %p243 = scmp.ne.s32.totalorder %s238, %s240
      %p244 = scmp.eq.s32.totalorder %s21, 0
      %p245 = por %p243, %p244
      %p246 = scmp.ne.s32.totalorder %s238, %s240
      %p247 = scmp.eq.s32.totalorder %s26, 1
      %p248 = por %p246, %p247
      %p249 = scmp.ne.s32.totalorder %s240, %s241
      %p250 = scmp.eq.s32.totalorder %s26, 0
      %p251 = por %p249, %p250
      %p252 = scmp.ne.s32.totalorder %s240, %s241
      %p253 = scmp.eq.s32.totalorder %s27, 1
      %p254 = por %p252, %p253
      %p256 = scmp.ne.s32.totalorder %s241, %s255
      %p257 = scmp.eq.s32.totalorder %s27, 0
      %p258 = por %p256, %p257
      %s259 = ssub.s32 %s21, %s28
      %p260 = scmp.eq.s32.totalorder %s259, 0
      %s262 = sadd.s32 %s261, 1
      %s263 = scalar_select %p260, %s261, %s262
      %p266 = pneg %p260
      %p267 = scmp.eq.s32.totalorder %s21, 1
      %p268 = por %p266, %p267
      %p269 = scmp.ne.s32.totalorder %s261, %s264
      %p270 = scmp.eq.s32.totalorder %s21, 0
      %p271 = por %p269, %p270
      %p272 = scmp.ne.s32.totalorder %s261, %s264
      %p273 = scmp.eq.s32.totalorder %s26, 1
      %p274 = por %p272, %p273
      %p275 = scmp.ne.s32.totalorder %s264, %s265
      %p276 = scmp.eq.s32.totalorder %s26, 0
      %p277 = por %p275, %p276
      %p278 = scmp.ne.s32.totalorder %s264, %s265
      %p279 = scmp.eq.s32.totalorder %s27, 1
      %p280 = por %p278, %p279
      %p282 = scmp.ne.s32.totalorder %s265, %s281
      %p283 = scmp.eq.s32.totalorder %s27, 0
      %p284 = por %p282, %p283
      %p285 = scmp.le.s32.totalorder 1, %s21
      %p286 = scmp.lt.s32.totalorder %s21, 3
      %p287 = pnand %p285, %p286
      %p288 = pneg %p287
      // Predicated region
      $region9: #{tpu_custom_call.1} parent=5 // pred_check
        _
      $region10: #{tpu_custom_call.1} parent=5 // pred_check_branch
        %290 = sbr.rel (%p287) target = $region12
      $region11: #{tpu_custom_call.1} parent=5 // pred_region
        %s291 = ssub.s32 %s21, 1
        // Predicated region
        $region13: #{tpu_custom_call.1} parent=11 // pred_check
          %p292 = pneg %p146
        $region14: #{tpu_custom_call.1} parent=11 // pred_check_branch
          %294 = sbr.rel (%p292) target = $region16
        $region15: #{tpu_custom_call.1} parent=11 // pred_region
          _
        $region16: #{tpu_custom_call.1} parent=11 // pred_fallthru
          _
        // Predicated region
        $region17: #{tpu_custom_call.1} parent=11 // pred_check
          %p295 = pneg %p167
        $region18: #{tpu_custom_call.1} parent=11 // pred_check_branch
          %297 = sbr.rel (%p295) target = $region20
        $region19: #{tpu_custom_call.1} parent=11 // pred_region
          %s299 = ssub.s32 48, 48
          %300 = vsyncadd [#allocation3], %s299
          %s301 = sshll.u32 [#allocation2], 4
          %s302 = int_to_ptr.vmem [resolvable:$true] %s301
          %307 = dma.hbm_to_vmem [thread:$0]  %s5, 48, %s302, [#allocation3], 16, 16, 1
        $region20: #{tpu_custom_call.1} parent=11 // pred_fallthru
          _
        // Predicated region
        $region21: #{tpu_custom_call.1} parent=11 // pred_check
          %p308 = pneg %p188
        $region22: #{tpu_custom_call.1} parent=11 // pred_check_branch
          %310 = sbr.rel (%p308) target = $region24
        $region23: #{tpu_custom_call.1} parent=11 // pred_region
          _
        $region24: #{tpu_custom_call.1} parent=11 // pred_fallthru
          _
        // Predicated region
        $region25: #{tpu_custom_call.1} parent=11 // pred_check
          %p311 = pneg %p209
        $region26: #{tpu_custom_call.1} parent=11 // pred_check_branch
          %313 = sbr.rel (%p311) target = $region28
        $region27: #{tpu_custom_call.1} parent=11 // pred_region
          _
        $region28: #{tpu_custom_call.1} parent=11 // pred_fallthru
          _
        // Predicated region
        $region29: #{tpu_custom_call.1} parent=11 // pred_check
          %p314 = pneg %p230
        $region30: #{tpu_custom_call.1} parent=11 // pred_check_branch
          %316 = sbr.rel (%p314) target = $region32
        $region31: #{tpu_custom_call.1} parent=11 // pred_region
          %s318 = ssub.s32 256, 256
          %319 = vsyncadd [#allocation6], %s318
          %s320 = sshll.u32 [#allocation5], 4
          %s321 = int_to_ptr.vmem [resolvable:$true] %s320
          %326 = dma.hbm_to_vmem [thread:$0]  %s8, 256, %s321, [#allocation6], 64, 64, 4
        $region32: #{tpu_custom_call.1} parent=11 // pred_fallthru
          _
        // Predicated region
        $region33: #{tpu_custom_call.1} parent=11 // pred_check
          %p327 = pneg %p251
        $region34: #{tpu_custom_call.1} parent=11 // pred_check_branch
          %329 = sbr.rel (%p327) target = $region36
        $region35: #{tpu_custom_call.1} parent=11 // pred_region
          _
        $region36: #{tpu_custom_call.1} parent=11 // pred_fallthru
          _
      $region12: #{tpu_custom_call.1} parent=5 // pred_fallthru
        _
      %p330 = scmp.lt.s32.totalorder %s21, 2
      // Predicated region
      $region37: #{tpu_custom_call.1} parent=5 // pred_check
        %p331 = pneg %p330
      $region38: #{tpu_custom_call.1} parent=5 // pred_check_branch
        %333 = sbr.rel (%p331) target = $region40
      $region39: #{tpu_custom_call.1} parent=5 // pred_region
        // Predicated region
        $region41: #{tpu_custom_call.1} parent=39 // pred_check
          %p334 = pneg %p41
        $region42: #{tpu_custom_call.1} parent=39 // pred_check_branch
          %336 = sbr.rel (%p334) target = $region44
        $region43: #{tpu_custom_call.1} parent=39 // pred_region
          %p337 = scmp.lt.s32.totalorder %s21, 1
          %s338 = scalar_select %p337, %s21, 1
          %s339 = smul.addr %s338, 8
          %s340 = scalar_lea.vmem %s0, %s339
        $region44: #{tpu_custom_call.1} parent=39 // pred_fallthru
          _
        // Predicated region
        $region45: #{tpu_custom_call.1} parent=39 // pred_check
          %p341 = pneg %p67
        $region46: #{tpu_custom_call.1} parent=39 // pred_check_branch
          %343 = sbr.rel (%p341) target = $region48
        $region47: #{tpu_custom_call.1} parent=39 // pred_region
          %p344 = scmp.lt.s32.totalorder %s21, 1
          %s345 = scalar_select %p344, %s21, 1
          %s346 = smul.addr %s345, 8
          %s347 = scalar_lea.vmem %s1, %s346
        $region48: #{tpu_custom_call.1} parent=39 // pred_fallthru
          _
        // Predicated region
        $region49: #{tpu_custom_call.1} parent=39 // pred_check
          %p348 = pneg %p93
        $region50: #{tpu_custom_call.1} parent=39 // pred_check_branch
          %350 = sbr.rel (%p348) target = $region52
        $region51: #{tpu_custom_call.1} parent=39 // pred_region
          %p351 = scmp.lt.s32.totalorder %s21, 1
          %s352 = scalar_select %p351, %s21, 1
          %s353 = smul.addr %s352, 8
          %s354 = scalar_lea.vmem %s2, %s353
        $region52: #{tpu_custom_call.1} parent=39 // pred_fallthru
          _
        // Predicated region
        $region53: #{tpu_custom_call.1} parent=39 // pred_check
          %p355 = pneg %p119
        $region54: #{tpu_custom_call.1} parent=39 // pred_check_branch
          %357 = sbr.rel (%p355) target = $region56
        $region55: #{tpu_custom_call.1} parent=39 // pred_region
          %p358 = scmp.lt.s32.totalorder %s21, 1
          %s359 = scalar_select %p358, %s21, 1
          %s360 = smul.addr %s359, 8
          %s361 = scalar_lea.vmem %s3, %s360
        $region56: #{tpu_custom_call.1} parent=39 // pred_fallthru
          _
      $region40: #{tpu_custom_call.1} parent=5 // pred_fallthru
        _
      %p362 = scmp.le.s32.totalorder 1, %s21
      %p363 = scmp.lt.s32.totalorder %s21, 3
      %p364 = pnand %p362, %p363
      %p365 = pneg %p364
      // Predicated region
      $region57: #{tpu_custom_call.1} parent=5 // pred_check
        _
      $region58: #{tpu_custom_call.1} parent=5 // pred_check_branch
        %367 = sbr.rel (%p364) target = $region60
      $region59: #{tpu_custom_call.1} parent=5 // pred_region
        %s368 = ssub.s32 %s21, 1
        // Predicated region
        $region61: #{tpu_custom_call.1} parent=59 // pred_check
          %p369 = pneg %p167
        $region62: #{tpu_custom_call.1} parent=59 // pred_check_branch
          %371 = sbr.rel (%p369) target = $region64
        $region63: #{tpu_custom_call.1} parent=59 // pred_region
          %372 = dma.done [#allocation3], 48
        $region64: #{tpu_custom_call.1} parent=59 // pred_fallthru
          _
        // Predicated region
        $region65: #{tpu_custom_call.1} parent=59 // pred_check
          %p373 = pneg %p230
        $region66: #{tpu_custom_call.1} parent=59 // pred_check_branch
          %375 = sbr.rel (%p373) target = $region68
        $region67: #{tpu_custom_call.1} parent=59 // pred_region
          %376 = dma.done [#allocation6], 256
        $region68: #{tpu_custom_call.1} parent=59 // pred_fallthru
          _
        %p377 = scmp.lt.s32.totalorder %s26, 1
        %s378 = scalar_select %p377, %s26, 1
        %s379 = smul.addr %s378, 8
        %s380 = scalar_lea.vmem %s0, %s379
        %p381 = pneg %p47
        %p382 = pneg %p44
        %p383 = scmp.lt.s32.totalorder %s26, 1
        %s384 = scalar_select %p383, %s26, 1
        %s385 = smul.addr %s384, 8
        %s386 = scalar_lea.vmem %s1, %s385
        %p387 = pneg %p73
        %p388 = pneg %p70
        %p389 = scmp.lt.s32.totalorder %s26, 1
        %s390 = scalar_select %p389, %s26, 1
        %s391 = smul.addr %s390, 8
        %s392 = scalar_lea.vmem %s2, %s391
        %p393 = pneg %p99
        %p394 = pneg %p96
        %p395 = scmp.lt.s32.totalorder %s26, 1
        %s396 = scalar_select %p395, %s26, 1
        %s397 = smul.addr %s396, 8
        %s398 = scalar_lea.vmem %s3, %s397
        %p399 = pneg %p125
        %p400 = pneg %p122
        %p401 = pneg %p146
        %p402 = pneg %p143
        %p403 = pneg %p167
        %p404 = pneg %p164
        %p405 = pneg %p188
        %p406 = pneg %p185
        %p407 = pneg %p209
        %p408 = pneg %p206
        %p409 = pneg %p230
        %p410 = pneg %p227
        %p411 = pneg %p251
        %p412 = pneg %p248
        %p413 = pneg %p277
        %p414 = pneg %p274
        %s415 = sand.u32 %s264, 1
        %s416 = scalar_lea.sflag [#allocation4], %s415
        %s417 = sand.u32 %s264, 1
        %s418 = smul.addr %s417, 8
        %s419 = scalar_lea.vmem [#allocation7], %s418
        %p420 = scmp.lt.s32.totalorder %s26, 1
        %s421 = scalar_select %p420, %s26, 1
        %s422 = smul.addr %s421, 8
        %s423 = scalar_lea.vmem %s0, %s422
        %p424 = scmp.lt.s32.totalorder %s26, 1
        %s425 = scalar_select %p424, %s26, 1
        %s426 = smul.addr %s425, 8
        %s427 = scalar_lea.vmem %s1, %s426
        %p428 = scmp.lt.s32.totalorder %s26, 1
        %s429 = scalar_select %p428, %s26, 1
        %s430 = smul.addr %s429, 8
        %s431 = scalar_lea.vmem %s2, %s430
        %p432 = scmp.lt.s32.totalorder %s26, 1
        %s433 = scalar_select %p432, %s26, 1
        %s434 = smul.addr %s433, 8
        %s435 = scalar_lea.vmem %s3, %s434
        %v437 = vld [vmem:[%s423] sm:$0xff]
        %v438 = vpack.c.bf16 %v437, %v437
        %v439 = vld [vmem:[%s4] sm:$0xf]
        %v440 = vld [vmem:[%s4 + $0x4] sm:$0xf]
        %v441 = vld [vmem:[%s4 + $0x8] sm:$0xf]
        %v442 = vld [vmem:[%s4 + $0xc] sm:$0xf]
        %v443 = vld [vmem:[#allocation2] sm:$0x1]
        %v445 = vlaneseq
        %v446 = vshrl.u32 %v445, 7
        %v447 = vsub.s32 0, %v446
        %v448 = vrot.slane %v443, %v447
        %v454 = vunpack.c.l.b16 %v439
        %v455 = vunpack.c.l.b16 %v440
        %v456 = vunpack.c.l.b16 %v441
        %v457 = vunpack.c.l.b16 %v442
        %v458 = vpack.c.b16 %v455, %v454
        %v459 = vpack.c.b16 %v457, %v456
        %vm462 = vcmask 261120
        %v464 = vsel %vm462, %v438, 0
        %466 = vmatprep.subr.bf16.mxu0 0
        %467 = vmatpush1.bf16.msra.mxu0 %v458
        %468 = vmatprep.subr.bf16.mxu0 0
        %469 = vmatpush1.bf16.msra.mxu0 %v459
        %470 = vmatprep.subr.bf16.mxu0 0
        %471 = vmatpush1.bf16.msra.mxu0 0
        %472 = vmatprep.subr.bf16.mxu0 0
        %473 = vmatpush1.bf16.msra.mxu0 0
        %474 = vmatprep.subr.bf16.mxu0 0
        %475 = vmatpush1.bf16.msra.mxu0 0
        %476 = vmatprep.subr.bf16.mxu0 0
        %477 = vmatpush1.bf16.msra.mxu0 0
        %478 = vmatprep.subr.bf16.mxu0 0
        %479 = vmatpush1.bf16.msra.mxu0 0
        %480 = vmatprep.subr.bf16.mxu0 0
        %481 = vmatpush1.bf16.msra.mxu0 0
        %482 = vmatprep.subr.bf16.mxu0 0
        %483 = vmatpush1.bf16.msra.mxu0 0
        %484 = vmatprep.subr.bf16.mxu0 0
        %485 = vmatpush1.bf16.msra.mxu0 0
        %486 = vmatprep.subr.bf16.mxu0 0
        %487 = vmatpush1.bf16.msra.mxu0 0
        %488 = vmatprep.subr.bf16.mxu0 0
        %489 = vmatpush1.bf16.msra.mxu0 0
        %490 = vmatprep.subr.bf16.mxu0 0
        %491 = vmatpush1.bf16.msra.mxu0 0
        %492 = vmatprep.subr.bf16.mxu0 0
        %493 = vmatpush1.bf16.msra.mxu0 0
        %494 = vmatprep.subr.bf16.mxu0 0
        %495 = vmatpush1.bf16.msra.mxu0 0
        %496 = vmatprep.subr.bf16.mxu0 0
        %497 = vmatpush1.bf16.msra.mxu0 0
        %498 = vmatprep.mubr.bf16.mxu0 0
        %499 = vmatmul.mubr.bf16.gmra.mrb[0].mxu0 %v464
        %v500 = vpop.f32.mrb[0].mxu0
        %v501 = vadd.f32 %v448, %v500
        %v502 = vpop.f32.mrb[0].mxu0
        %v503 = vpop.f32.mrb[0].mxu0
        %v504 = vpop.f32.mrb[0].mxu0
        %505 = vdwg.mxu0
        %v506 = vld [vmem:[%s427] sm:$0xff]
        %v507 = vpack.c.bf16 %v506, %v506
        %s508 = scalar_lea.vmem %s4, 16
        %v509 = vld [vmem:[%s508] sm:$0xf]
        %v510 = vld [vmem:[%s508 + $0x4] sm:$0xf]
        %v511 = vld [vmem:[%s508 + $0x8] sm:$0xf]
        %v512 = vld [vmem:[%s508 + $0xc] sm:$0xf]
        %s513 = scalar_lea.vmem [#allocation2], 1
        %v514 = vld [vmem:[%s513] sm:$0x1]
        %v516 = vlaneseq
        %v517 = vshrl.u32 %v516, 7
        %v518 = vsub.s32 0, %v517
        %v519 = vrot.slane %v514, %v518
        %v525 = vunpack.c.l.b16 %v509
        %v526 = vunpack.c.l.b16 %v510
        %v527 = vunpack.c.l.b16 %v511
        %v528 = vunpack.c.l.b16 %v512
        %v529 = vpack.c.b16 %v526, %v525
        %v530 = vpack.c.b16 %v528, %v527
        %v534 = vsel %vm462, %v507, 0
        %536 = vmatprep.subr.bf16.mxu0 0
        %537 = vmatpush1.bf16.msra.mxu0 %v529
        %538 = vmatprep.subr.bf16.mxu0 0
        %539 = vmatpush1.bf16.msra.mxu0 %v530
        %540 = vmatprep.subr.bf16.mxu0 0
        %541 = vmatpush1.bf16.msra.mxu0 0
        %542 = vmatprep.subr.bf16.mxu0 0
        %543 = vmatpush1.bf16.msra.mxu0 0
        %544 = vmatprep.subr.bf16.mxu0 0
        %545 = vmatpush1.bf16.msra.mxu0 0
        %546 = vmatprep.subr.bf16.mxu0 0
        %547 = vmatpush1.bf16.msra.mxu0 0
        %548 = vmatprep.subr.bf16.mxu0 0
        %549 = vmatpush1.bf16.msra.mxu0 0
        %550 = vmatprep.subr.bf16.mxu0 0
        %551 = vmatpush1.bf16.msra.mxu0 0
        %552 = vmatprep.subr.bf16.mxu0 0
        %553 = vmatpush1.bf16.msra.mxu0 0
        %554 = vmatprep.subr.bf16.mxu0 0
        %555 = vmatpush1.bf16.msra.mxu0 0
        %556 = vmatprep.subr.bf16.mxu0 0
        %557 = vmatpush1.bf16.msra.mxu0 0
        %558 = vmatprep.subr.bf16.mxu0 0
        %559 = vmatpush1.bf16.msra.mxu0 0
        %560 = vmatprep.subr.bf16.mxu0 0
        %561 = vmatpush1.bf16.msra.mxu0 0
        %562 = vmatprep.subr.bf16.mxu0 0
        %563 = vmatpush1.bf16.msra.mxu0 0
        %564 = vmatprep.subr.bf16.mxu0 0
        %565 = vmatpush1.bf16.msra.mxu0 0
        %566 = vmatprep.subr.bf16.mxu0 0
        %567 = vmatpush1.bf16.msra.mxu0 0
        %568 = vmatprep.mubr.bf16.mxu0 0
        %569 = vmatmul.mubr.bf16.gmra.mrb[0].mxu0 %v534
        %v570 = vpop.f32.mrb[0].mxu0
        %v571 = vadd.f32 %v519, %v570
        %v572 = vpop.f32.mrb[0].mxu0
        %v573 = vpop.f32.mrb[0].mxu0
        %v574 = vpop.f32.mrb[0].mxu0
        %575 = vdwg.mxu0
        %v576 = vld [vmem:[%s431] sm:$0xff]
        %v577 = vpack.c.bf16 %v576, %v576
        %s578 = scalar_lea.vmem %s4, 32
        %v579 = vld [vmem:[%s578] sm:$0xf]
        %v580 = vld [vmem:[%s578 + $0x4] sm:$0xf]
        %v581 = vld [vmem:[%s578 + $0x8] sm:$0xf]
        %v582 = vld [vmem:[%s578 + $0xc] sm:$0xf]
        %s583 = scalar_lea.vmem [#allocation2], 2
        %v584 = vld [vmem:[%s583] sm:$0x1]
        %v586 = vlaneseq
        %v587 = vshrl.u32 %v586, 7
        %v588 = vsub.s32 0, %v587
        %v589 = vrot.slane %v584, %v588
        %v595 = vunpack.c.l.b16 %v579
        %v596 = vunpack.c.l.b16 %v580
        %v597 = vunpack.c.l.b16 %v581
        %v598 = vunpack.c.l.b16 %v582
        %v599 = vpack.c.b16 %v596, %v595
        %v600 = vpack.c.b16 %v598, %v597
        %v604 = vsel %vm462, %v577, 0
        %606 = vmatprep.subr.bf16.mxu0 0
        %607 = vmatpush1.bf16.msra.mxu0 %v599
        %608 = vmatprep.subr.bf16.mxu0 0
        %609 = vmatpush1.bf16.msra.mxu0 %v600
        %610 = vmatprep.subr.bf16.mxu0 0
        %611 = vmatpush1.bf16.msra.mxu0 0
        %612 = vmatprep.subr.bf16.mxu0 0
        %613 = vmatpush1.bf16.msra.mxu0 0
        %614 = vmatprep.subr.bf16.mxu0 0
        %615 = vmatpush1.bf16.msra.mxu0 0
        %616 = vmatprep.subr.bf16.mxu0 0
        %617 = vmatpush1.bf16.msra.mxu0 0
        %618 = vmatprep.subr.bf16.mxu0 0
        %619 = vmatpush1.bf16.msra.mxu0 0
        %620 = vmatprep.subr.bf16.mxu0 0
        %621 = vmatpush1.bf16.msra.mxu0 0
        %622 = vmatprep.subr.bf16.mxu0 0
        %623 = vmatpush1.bf16.msra.mxu0 0
        %624 = vmatprep.subr.bf16.mxu0 0
        %625 = vmatpush1.bf16.msra.mxu0 0
        %626 = vmatprep.subr.bf16.mxu0 0
        %627 = vmatpush1.bf16.msra.mxu0 0
        %628 = vmatprep.subr.bf16.mxu0 0
        %629 = vmatpush1.bf16.msra.mxu0 0
        %630 = vmatprep.subr.bf16.mxu0 0
        %631 = vmatpush1.bf16.msra.mxu0 0
        %632 = vmatprep.subr.bf16.mxu0 0
        %633 = vmatpush1.bf16.msra.mxu0 0
        %634 = vmatprep.subr.bf16.mxu0 0
        %635 = vmatpush1.bf16.msra.mxu0 0
        %636 = vmatprep.subr.bf16.mxu0 0
        %637 = vmatpush1.bf16.msra.mxu0 0
        %638 = vmatprep.mubr.bf16.mxu0 0
        %639 = vmatmul.mubr.bf16.gmra.mrb[0].mxu0 %v604
        %v640 = vpop.f32.mrb[0].mxu0
        %v641 = vadd.f32 %v589, %v640
        %v642 = vpop.f32.mrb[0].mxu0
        %v643 = vpop.f32.mrb[0].mxu0
        %v644 = vpop.f32.mrb[0].mxu0
        %645 = vdwg.mxu0
        %v646 = vmul.f32 %v501, 0.35355338
        %v647 = vpack.c.bf16 %v646, %v646
        %v648 = vpack.c.bf16 %v571, %v571
        %vm649 = vcmask 64512
        %v651 = vsel %vm649, %v647, 0
        %v654 = vsel %vm649, %v648, 0
        %656 = vmatprep.subr.bf16.mxu0 0
        %657 = vmatpush1.bf16.xpose.msra.mxu0 %v654
        %658 = vmatprep.subr.bf16.mxu0 0
        %659 = vmatpush1.bf16.xpose.msra.mxu0 0
        %660 = vmatprep.subr.bf16.mxu0 0
        %661 = vmatpush1.bf16.xpose.msra.mxu0 0
        %662 = vmatprep.subr.bf16.mxu0 0
        %663 = vmatpush1.bf16.xpose.msra.mxu0 0
        %664 = vmatprep.subr.bf16.mxu0 0
        %665 = vmatpush1.bf16.xpose.msra.mxu0 0
        %666 = vmatprep.subr.bf16.mxu0 0
        %667 = vmatpush1.bf16.xpose.msra.mxu0 0
        %668 = vmatprep.subr.bf16.mxu0 0
        %669 = vmatpush1.bf16.xpose.msra.mxu0 0
        %670 = vmatprep.subr.bf16.mxu0 0
        %671 = vmatpush1.bf16.xpose.msra.mxu0 0
        %672 = vmatprep.subr.bf16.mxu0 0
        %673 = vmatpush1.bf16.xpose.msra.mxu0 0
        %674 = vmatprep.subr.bf16.mxu0 0
        %675 = vmatpush1.bf16.xpose.msra.mxu0 0
        %676 = vmatprep.subr.bf16.mxu0 0
        %677 = vmatpush1.bf16.xpose.msra.mxu0 0
        %678 = vmatprep.subr.bf16.mxu0 0
        %679 = vmatpush1.bf16.xpose.msra.mxu0 0
        %680 = vmatprep.subr.bf16.mxu0 0
        %681 = vmatpush1.bf16.xpose.msra.mxu0 0
        %682 = vmatprep.subr.bf16.mxu0 0
        %683 = vmatpush1.bf16.xpose.msra.mxu0 0
        %684 = vmatprep.subr.bf16.mxu0 0
        %685 = vmatpush1.bf16.xpose.msra.mxu0 0
        %686 = vmatprep.subr.bf16.mxu0 0
        %687 = vmatpush1.bf16.xpose.msra.mxu0 0
        %688 = vmatprep.mubr.bf16.mxu0 0
        %689 = vmatmul.mubr.bf16.gmra.mrb[0].mxu0 %v651
        %v690 = vpop.f32.mrb[0].mxu0
        %v691 = vadd.f32 0.0, %v690
        %v692 = vpop.f32.mrb[0].mxu0
        %v693 = vpop.f32.mrb[0].mxu0
        %v694 = vpop.f32.mrb[0].mxu0
        %695 = vdwg.mxu0
        %v696 = vsel %vm649, %v691, -inf
        %697 = vmax.xlane.f32.xlu0 %v696
        %v698 = vpop.xlane.xlu0 %697
        %v699 = vsub.f32 %v691, %v698
        %v700 = vmul.f32 %v699, 1.442695
        %v701 = vpow.pop %v700
        %v702 = vsel %vm649, %v701, 0.0
        %703 = vadd.xlane.f32.xlu0 %v702
        %v704 = vpop.xlane.xlu0 %703
        %v705 = vrcp.pop %v704
        %v706 = vmul.f32 %v701, %v705
        %v707 = vpack.c.bf16 %v706, %v706
        %v708 = vpack.c.bf16 %v641, %v641
        %v710 = vsel %vm649, %v707, 0
        %vm712 = vcmask 1043456
        %v714 = vsel %vm712, %v708, 0
        %716 = vmatprep.subr.bf16.mxu0 0
        %717 = vmatpush1.bf16.msra.mxu0 %v714
        %718 = vmatprep.subr.bf16.mxu0 0
        %719 = vmatpush1.bf16.msra.mxu0 0
        %720 = vmatprep.subr.bf16.mxu0 0
        %721 = vmatpush1.bf16.msra.mxu0 0
        %722 = vmatprep.subr.bf16.mxu0 0
        %723 = vmatpush1.bf16.msra.mxu0 0
        %724 = vmatprep.subr.bf16.mxu0 0
        %725 = vmatpush1.bf16.msra.mxu0 0
        %726 = vmatprep.subr.bf16.mxu0 0
        %727 = vmatpush1.bf16.msra.mxu0 0
        %728 = vmatprep.subr.bf16.mxu0 0
        %729 = vmatpush1.bf16.msra.mxu0 0
        %730 = vmatprep.subr.bf16.mxu0 0
        %731 = vmatpush1.bf16.msra.mxu0 0
        %732 = vmatprep.subr.bf16.mxu0 0
        %733 = vmatpush1.bf16.msra.mxu0 0
        %734 = vmatprep.subr.bf16.mxu0 0
        %735 = vmatpush1.bf16.msra.mxu0 0
        %736 = vmatprep.subr.bf16.mxu0 0
        %737 = vmatpush1.bf16.msra.mxu0 0
        %738 = vmatprep.subr.bf16.mxu0 0
        %739 = vmatpush1.bf16.msra.mxu0 0
        %740 = vmatprep.subr.bf16.mxu0 0
        %741 = vmatpush1.bf16.msra.mxu0 0
        %742 = vmatprep.subr.bf16.mxu0 0
        %743 = vmatpush1.bf16.msra.mxu0 0
        %744 = vmatprep.subr.bf16.mxu0 0
        %745 = vmatpush1.bf16.msra.mxu0 0
        %746 = vmatprep.subr.bf16.mxu0 0
        %747 = vmatpush1.bf16.msra.mxu0 0
        %748 = vmatprep.mubr.bf16.mxu0 0
        %749 = vmatmul.mubr.bf16.gmra.mrb[0].mxu0 %v710
        %v750 = vpop.f32.mrb[0].mxu0
        %v751 = vadd.f32 0.0, %v750
        %v752 = vpop.f32.mrb[0].mxu0
        %v753 = vpop.f32.mrb[0].mxu0
        %v754 = vpop.f32.mrb[0].mxu0
        %755 = vdwg.mxu0
        %757 = vrot.lane.b32.xlu0 %v751, 8
        %v758 = vpop.permute.xlu0 %757
        %vm760 = vcmask 130112
        %761 = vst.msk [vmem:[%s419] sm:$0xff] %vm760, %v758
        %v762 = vld [vmem:[%s435] sm:$0xff]
        %v763 = vpack.c.bf16 %v762, %v762
        %v764 = vld [vmem:[%s6] sm:$0xf]
        %v765 = vld [vmem:[%s6 + $0x4] sm:$0xf]
        %v766 = vld [vmem:[%s6 + $0x8] sm:$0xf]
        %v767 = vld [vmem:[%s6 + $0xc] sm:$0xf]
        %v768 = vld [vmem:[%s7] sm:$0x1]
        %v770 = vlaneseq
        %v771 = vshrl.u32 %v770, 7
        %v772 = vsub.s32 0, %v771
        %v773 = vrot.slane %v768, %v772
        %v779 = vunpack.c.l.b16 %v764
        %v780 = vunpack.c.l.b16 %v765
        %v781 = vunpack.c.l.b16 %v766
        %v782 = vunpack.c.l.b16 %v767
        %v783 = vpack.c.b16 %v780, %v779
        %v784 = vpack.c.b16 %v782, %v781
        %v788 = vsel %vm462, %v763, 0
        %790 = vmatprep.subr.bf16.mxu0 0
        %791 = vmatpush1.bf16.msra.mxu0 %v783
        %792 = vmatprep.subr.bf16.mxu0 0
        %793 = vmatpush1.bf16.msra.mxu0 %v784
        %794 = vmatprep.subr.bf16.mxu0 0
        %795 = vmatpush1.bf16.msra.mxu0 0
        %796 = vmatprep.subr.bf16.mxu0 0
        %797 = vmatpush1.bf16.msra.mxu0 0
        %798 = vmatprep.subr.bf16.mxu0 0
        %799 = vmatpush1.bf16.msra.mxu0 0
        %800 = vmatprep.subr.bf16.mxu0 0
        %801 = vmatpush1.bf16.msra.mxu0 0
        %802 = vmatprep.subr.bf16.mxu0 0
        %803 = vmatpush1.bf16.msra.mxu0 0
        %804 = vmatprep.subr.bf16.mxu0 0
        %805 = vmatpush1.bf16.msra.mxu0 0
        %806 = vmatprep.subr.bf16.mxu0 0
        %807 = vmatpush1.bf16.msra.mxu0 0
        %808 = vmatprep.subr.bf16.mxu0 0
        %809 = vmatpush1.bf16.msra.mxu0 0
        %810 = vmatprep.subr.bf16.mxu0 0
        %811 = vmatpush1.bf16.msra.mxu0 0
        %812 = vmatprep.subr.bf16.mxu0 0
        %813 = vmatpush1.bf16.msra.mxu0 0
        %814 = vmatprep.subr.bf16.mxu0 0
        %815 = vmatpush1.bf16.msra.mxu0 0
        %816 = vmatprep.subr.bf16.mxu0 0
        %817 = vmatpush1.bf16.msra.mxu0 0
        %818 = vmatprep.subr.bf16.mxu0 0
        %819 = vmatpush1.bf16.msra.mxu0 0
        %820 = vmatprep.subr.bf16.mxu0 0
        %821 = vmatpush1.bf16.msra.mxu0 0
        %822 = vmatprep.mubr.bf16.mxu0 0
        %823 = vmatmul.mubr.bf16.gmra.mrb[0].mxu0 %v788
        %v824 = vpop.f32.mrb[0].mxu0
        %v825 = vadd.f32 %v773, %v824
        %v826 = vpop.f32.mrb[0].mxu0
        %v827 = vpop.f32.mrb[0].mxu0
        %v828 = vpop.f32.mrb[0].mxu0
        %829 = vdwg.mxu0
        %v830 = vmul.f32 %v825, 0.35355338
        %v831 = vpack.c.bf16 %v830, %v830
        %v832 = vpack.c.bf16 %v825, %v825
        %834 = vrot.lane.b32.xlu0 %v832, 104
        %v835 = vpop.permute.xlu0 %834
        %v837 = vsel %vm649, %v831, 0
        %v840 = vsel %vm649, %v835, 0
        %842 = vmatprep.subr.bf16.mxu0 0
        %843 = vmatpush1.bf16.xpose.msra.mxu0 %v840
        %844 = vmatprep.subr.bf16.mxu0 0
        %845 = vmatpush1.bf16.xpose.msra.mxu0 0
        %846 = vmatprep.subr.bf16.mxu0 0
        %847 = vmatpush1.bf16.xpose.msra.mxu0 0
        %848 = vmatprep.subr.bf16.mxu0 0
        %849 = vmatpush1.bf16.xpose.msra.mxu0 0
        %850 = vmatprep.subr.bf16.mxu0 0
        %851 = vmatpush1.bf16.xpose.msra.mxu0 0
        %852 = vmatprep.subr.bf16.mxu0 0
        %853 = vmatpush1.bf16.xpose.msra.mxu0 0
        %854 = vmatprep.subr.bf16.mxu0 0
        %855 = vmatpush1.bf16.xpose.msra.mxu0 0
        %856 = vmatprep.subr.bf16.mxu0 0
        %857 = vmatpush1.bf16.xpose.msra.mxu0 0
        %858 = vmatprep.subr.bf16.mxu0 0
        %859 = vmatpush1.bf16.xpose.msra.mxu0 0
        %860 = vmatprep.subr.bf16.mxu0 0
        %861 = vmatpush1.bf16.xpose.msra.mxu0 0
        %862 = vmatprep.subr.bf16.mxu0 0
        %863 = vmatpush1.bf16.xpose.msra.mxu0 0
        %864 = vmatprep.subr.bf16.mxu0 0
        %865 = vmatpush1.bf16.xpose.msra.mxu0 0
        %866 = vmatprep.subr.bf16.mxu0 0
        %867 = vmatpush1.bf16.xpose.msra.mxu0 0
        %868 = vmatprep.subr.bf16.mxu0 0
        %869 = vmatpush1.bf16.xpose.msra.mxu0 0
        %870 = vmatprep.subr.bf16.mxu0 0
        %871 = vmatpush1.bf16.xpose.msra.mxu0 0
        %872 = vmatprep.subr.bf16.mxu0 0
        %873 = vmatpush1.bf16.xpose.msra.mxu0 0
        %874 = vmatprep.mubr.bf16.mxu0 0
        %875 = vmatmul.mubr.bf16.gmra.mrb[0].mxu0 %v837
        %v876 = vpop.f32.mrb[0].mxu0
        %v877 = vadd.f32 0.0, %v876
        %v878 = vpop.f32.mrb[0].mxu0
        %v879 = vpop.f32.mrb[0].mxu0
        %v880 = vpop.f32.mrb[0].mxu0
        %881 = vdwg.mxu0
        %v882 = vsel %vm649, %v877, -inf
        %883 = vmax.xlane.f32.xlu0 %v882
        %v884 = vpop.xlane.xlu0 %883
        %v885 = vsub.f32 %v877, %v884
        %v886 = vmul.f32 %v885, 1.442695
        %v887 = vpow.pop %v886
        %v888 = vsel %vm649, %v887, 0.0
        %889 = vadd.xlane.f32.xlu0 %v888
        %v890 = vpop.xlane.xlu0 %889
        %v891 = vrcp.pop %v890
        %v892 = vmul.f32 %v887, %v891
        %v893 = vpack.c.bf16 %v892, %v892
        %894 = vrot.lane.b32.xlu0 %v832, 80
        %v895 = vpop.permute.xlu0 %894
        %v897 = vsel %vm649, %v893, 0
        %v900 = vsel %vm712, %v895, 0
        %902 = vmatprep.subr.bf16.mxu0 0
        %903 = vmatpush1.bf16.msra.mxu0 %v900
        %904 = vmatprep.subr.bf16.mxu0 0
        %905 = vmatpush1.bf16.msra.mxu0 0
        %906 = vmatprep.subr.bf16.mxu0 0
        %907 = vmatpush1.bf16.msra.mxu0 0
        %908 = vmatprep.subr.bf16.mxu0 0
        %909 = vmatpush1.bf16.msra.mxu0 0
        %910 = vmatprep.subr.bf16.mxu0 0
        %911 = vmatpush1.bf16.msra.mxu0 0
        %912 = vmatprep.subr.bf16.mxu0 0
        %913 = vmatpush1.bf16.msra.mxu0 0
        %914 = vmatprep.subr.bf16.mxu0 0
        %915 = vmatpush1.bf16.msra.mxu0 0
        %916 = vmatprep.subr.bf16.mxu0 0
        %917 = vmatpush1.bf16.msra.mxu0 0
        %918 = vmatprep.subr.bf16.mxu0 0
        %919 = vmatpush1.bf16.msra.mxu0 0
        %920 = vmatprep.subr.bf16.mxu0 0
        %921 = vmatpush1.bf16.msra.mxu0 0
        %922 = vmatprep.subr.bf16.mxu0 0
        %923 = vmatpush1.bf16.msra.mxu0 0
        %924 = vmatprep.subr.bf16.mxu0 0
        %925 = vmatpush1.bf16.msra.mxu0 0
        %926 = vmatprep.subr.bf16.mxu0 0
        %927 = vmatpush1.bf16.msra.mxu0 0
        %928 = vmatprep.subr.bf16.mxu0 0
        %929 = vmatpush1.bf16.msra.mxu0 0
        %930 = vmatprep.subr.bf16.mxu0 0
        %931 = vmatpush1.bf16.msra.mxu0 0
        %932 = vmatprep.subr.bf16.mxu0 0
        %933 = vmatpush1.bf16.msra.mxu0 0
        %934 = vmatprep.mubr.bf16.mxu0 0
        %935 = vmatmul.mubr.bf16.gmra.mrb[0].mxu0 %v897
        %v936 = vpop.f32.mrb[0].mxu0
        %v937 = vadd.f32 0.0, %v936
        %v938 = vpop.f32.mrb[0].mxu0
        %v939 = vpop.f32.mrb[0].mxu0
        %v940 = vpop.f32.mrb[0].mxu0
        %941 = vdwg.mxu0
        %942 = vst.msk [vmem:[%s419] sm:$0xff] %vm649, %v937
        %944 = vrot.lane.b32.xlu0 %v831, 120
        %v945 = vpop.permute.xlu0 %944
        %946 = vrot.lane.b32.xlu0 %v832, 96
        %v947 = vpop.permute.xlu0 %946
        %v949 = vsel %vm649, %v945, 0
        %v952 = vsel %vm649, %v947, 0
        %954 = vmatprep.subr.bf16.mxu0 0
        %955 = vmatpush1.bf16.xpose.msra.mxu0 %v952
        %956 = vmatprep.subr.bf16.mxu0 0
        %957 = vmatpush1.bf16.xpose.msra.mxu0 0
        %958 = vmatprep.subr.bf16.mxu0 0
        %959 = vmatpush1.bf16.xpose.msra.mxu0 0
        %960 = vmatprep.subr.bf16.mxu0 0
        %961 = vmatpush1.bf16.xpose.msra.mxu0 0
        %962 = vmatprep.subr.bf16.mxu0 0
        %963 = vmatpush1.bf16.xpose.msra.mxu0 0
        %964 = vmatprep.subr.bf16.mxu0 0
        %965 = vmatpush1.bf16.xpose.msra.mxu0 0
        %966 = vmatprep.subr.bf16.mxu0 0
        %967 = vmatpush1.bf16.xpose.msra.mxu0 0
        %968 = vmatprep.subr.bf16.mxu0 0
        %969 = vmatpush1.bf16.xpose.msra.mxu0 0
        %970 = vmatprep.subr.bf16.mxu0 0
        %971 = vmatpush1.bf16.xpose.msra.mxu0 0
        %972 = vmatprep.subr.bf16.mxu0 0
        %973 = vmatpush1.bf16.xpose.msra.mxu0 0
        %974 = vmatprep.subr.bf16.mxu0 0
        %975 = vmatpush1.bf16.xpose.msra.mxu0 0
        %976 = vmatprep.subr.bf16.mxu0 0
        %977 = vmatpush1.bf16.xpose.msra.mxu0 0
        %978 = vmatprep.subr.bf16.mxu0 0
        %979 = vmatpush1.bf16.xpose.msra.mxu0 0
        %980 = vmatprep.subr.bf16.mxu0 0
        %981 = vmatpush1.bf16.xpose.msra.mxu0 0
        %982 = vmatprep.subr.bf16.mxu0 0
        %983 = vmatpush1.bf16.xpose.msra.mxu0 0
        %984 = vmatprep.subr.bf16.mxu0 0
        %985 = vmatpush1.bf16.xpose.msra.mxu0 0
        %986 = vmatprep.mubr.bf16.mxu0 0
        %987 = vmatmul.mubr.bf16.gmra.mrb[0].mxu0 %v949
        %v988 = vpop.f32.mrb[0].mxu0
        %v989 = vadd.f32 0.0, %v988
        %v990 = vpop.f32.mrb[0].mxu0
        %v991 = vpop.f32.mrb[0].mxu0
        %v992 = vpop.f32.mrb[0].mxu0
        %993 = vdwg.mxu0
        %v994 = vsel %vm649, %v989, -inf
        %995 = vmax.xlane.f32.xlu0 %v994
        %v996 = vpop.xlane.xlu0 %995
        %v997 = vsub.f32 %v989, %v996
        %v998 = vmul.f32 %v997, 1.442695
        %v999 = vpow.pop %v998
        %v1000 = vsel %vm649, %v999, 0.0
        %1001 = vadd.xlane.f32.xlu0 %v1000
        %v1002 = vpop.xlane.xlu0 %1001
        %v1003 = vrcp.pop %v1002
        %v1004 = vmul.f32 %v999, %v1003
        %v1005 = vpack.c.bf16 %v1004, %v1004
        %1006 = vrot.lane.b32.xlu0 %v832, 72
        %v1007 = vpop.permute.xlu0 %1006
        %v1009 = vsel %vm649, %v1005, 0
        %v1012 = vsel %vm712, %v1007, 0
        %1014 = vmatprep.subr.bf16.mxu0 0
        %1015 = vmatpush1.bf16.msra.mxu0 %v1012
        %1016 = vmatprep.subr.bf16.mxu0 0
        %1017 = vmatpush1.bf16.msra.mxu0 0
        %1018 = vmatprep.subr.bf16.mxu0 0
        %1019 = vmatpush1.bf16.msra.mxu0 0
        %1020 = vmatprep.subr.bf16.mxu0 0
        %1021 = vmatpush1.bf16.msra.mxu0 0
        %1022 = vmatprep.subr.bf16.mxu0 0
        %1023 = vmatpush1.bf16.msra.mxu0 0
        %1024 = vmatprep.subr.bf16.mxu0 0
        %1025 = vmatpush1.bf16.msra.mxu0 0
        %1026 = vmatprep.subr.bf16.mxu0 0
        %1027 = vmatpush1.bf16.msra.mxu0 0
        %1028 = vmatprep.subr.bf16.mxu0 0
        %1029 = vmatpush1.bf16.msra.mxu0 0
        %1030 = vmatprep.subr.bf16.mxu0 0
        %1031 = vmatpush1.bf16.msra.mxu0 0
        %1032 = vmatprep.subr.bf16.mxu0 0
        %1033 = vmatpush1.bf16.msra.mxu0 0
        %1034 = vmatprep.subr.bf16.mxu0 0
        %1035 = vmatpush1.bf16.msra.mxu0 0
        %1036 = vmatprep.subr.bf16.mxu0 0
        %1037 = vmatpush1.bf16.msra.mxu0 0
        %1038 = vmatprep.subr.bf16.mxu0 0
        %1039 = vmatpush1.bf16.msra.mxu0 0
        %1040 = vmatprep.subr.bf16.mxu0 0
        %1041 = vmatpush1.bf16.msra.mxu0 0
        %1042 = vmatprep.subr.bf16.mxu0 0
        %1043 = vmatpush1.bf16.msra.mxu0 0
        %1044 = vmatprep.subr.bf16.mxu0 0
        %1045 = vmatpush1.bf16.msra.mxu0 0
        %1046 = vmatprep.mubr.bf16.mxu0 0
        %1047 = vmatmul.mubr.bf16.gmra.mrb[0].mxu0 %v1009
        %v1048 = vpop.f32.mrb[0].mxu0
        %v1049 = vadd.f32 0.0, %v1048
        %v1050 = vpop.f32.mrb[0].mxu0
        %v1051 = vpop.f32.mrb[0].mxu0
        %v1052 = vpop.f32.mrb[0].mxu0
        %1053 = vdwg.mxu0
        %1055 = vrot.lane.b32.xlu0 %v1049, 16
        %v1056 = vpop.permute.xlu0 %1055
        %vm1058 = vcmask 195712
        %1059 = vst.msk [vmem:[%s419] sm:$0xff] %vm1058, %v1056
        %1060 = vrot.lane.b32.xlu0 %v831, 112
        %v1061 = vpop.permute.xlu0 %1060
        %1062 = vrot.lane.b32.xlu0 %v832, 88
        %v1063 = vpop.permute.xlu0 %1062
        %v1065 = vsel %vm649, %v1061, 0
        %v1068 = vsel %vm649, %v1063, 0
        %1070 = vmatprep.subr.bf16.mxu0 0
        %1071 = vmatpush1.bf16.xpose.msra.mxu0 %v1068
        %1072 = vmatprep.subr.bf16.mxu0 0
        %1073 = vmatpush1.bf16.xpose.msra.mxu0 0
        %1074 = vmatprep.subr.bf16.mxu0 0
        %1075 = vmatpush1.bf16.xpose.msra.mxu0 0
        %1076 = vmatprep.subr.bf16.mxu0 0
        %1077 = vmatpush1.bf16.xpose.msra.mxu0 0
        %1078 = vmatprep.subr.bf16.mxu0 0
        %1079 = vmatpush1.bf16.xpose.msra.mxu0 0
        %1080 = vmatprep.subr.bf16.mxu0 0
        %1081 = vmatpush1.bf16.xpose.msra.mxu0 0
        %1082 = vmatprep.subr.bf16.mxu0 0
        %1083 = vmatpush1.bf16.xpose.msra.mxu0 0
        %1084 = vmatprep.subr.bf16.mxu0 0
        %1085 = vmatpush1.bf16.xpose.msra.mxu0 0
        %1086 = vmatprep.subr.bf16.mxu0 0
        %1087 = vmatpush1.bf16.xpose.msra.mxu0 0
        %1088 = vmatprep.subr.bf16.mxu0 0
        %1089 = vmatpush1.bf16.xpose.msra.mxu0 0
        %1090 = vmatprep.subr.bf16.mxu0 0
        %1091 = vmatpush1.bf16.xpose.msra.mxu0 0
        %1092 = vmatprep.subr.bf16.mxu0 0
        %1093 = vmatpush1.bf16.xpose.msra.mxu0 0
        %1094 = vmatprep.subr.bf16.mxu0 0
        %1095 = vmatpush1.bf16.xpose.msra.mxu0 0
        %1096 = vmatprep.subr.bf16.mxu0 0
        %1097 = vmatpush1.bf16.xpose.msra.mxu0 0
        %1098 = vmatprep.subr.bf16.mxu0 0
        %1099 = vmatpush1.bf16.xpose.msra.mxu0 0
        %1100 = vmatprep.subr.bf16.mxu0 0
        %1101 = vmatpush1.bf16.xpose.msra.mxu0 0
        %1102 = vmatprep.mubr.bf16.mxu0 0
        %1103 = vmatmul.mubr.bf16.gmra.mrb[0].mxu0 %v1065
        %v1104 = vpop.f32.mrb[0].mxu0
        %v1105 = vadd.f32 0.0, %v1104
        %v1106 = vpop.f32.mrb[0].mxu0
        %v1107 = vpop.f32.mrb[0].mxu0
        %v1108 = vpop.f32.mrb[0].mxu0
        %1109 = vdwg.mxu0
        %v1110 = vsel %vm649, %v1105, -inf
        %1111 = vmax.xlane.f32.xlu0 %v1110
        %v1112 = vpop.xlane.xlu0 %1111
        %v1113 = vsub.f32 %v1105, %v1112
        %v1114 = vmul.f32 %v1113, 1.442695
        %v1115 = vpow.pop %v1114
        %v1116 = vsel %vm649, %v1115, 0.0
        %1117 = vadd.xlane.f32.xlu0 %v1116
        %v1118 = vpop.xlane.xlu0 %1117
        %v1119 = vrcp.pop %v1118
        %v1120 = vmul.f32 %v1115, %v1119
        %v1121 = vpack.c.bf16 %v1120, %v1120
        %1122 = vrot.lane.b32.xlu0 %v832, 64
        %v1123 = vpop.permute.xlu0 %1122
        %v1125 = vsel %vm649, %v1121, 0
        %v1128 = vsel %vm712, %v1123, 0
        %1130 = vmatprep.subr.bf16.mxu0 0
        %1131 = vmatpush1.bf16.msra.mxu0 %v1128
        %1132 = vmatprep.subr.bf16.mxu0 0
        %1133 = vmatpush1.bf16.msra.mxu0 0
        %1134 = vmatprep.subr.bf16.mxu0 0
        %1135 = vmatpush1.bf16.msra.mxu0 0
        %1136 = vmatprep.subr.bf16.mxu0 0
        %1137 = vmatpush1.bf16.msra.mxu0 0
        %1138 = vmatprep.subr.bf16.mxu0 0
        %1139 = vmatpush1.bf16.msra.mxu0 0
        %1140 = vmatprep.subr.bf16.mxu0 0
        %1141 = vmatpush1.bf16.msra.mxu0 0
        %1142 = vmatprep.subr.bf16.mxu0 0
        %1143 = vmatpush1.bf16.msra.mxu0 0
        %1144 = vmatprep.subr.bf16.mxu0 0
        %1145 = vmatpush1.bf16.msra.mxu0 0
        %1146 = vmatprep.subr.bf16.mxu0 0
        %1147 = vmatpush1.bf16.msra.mxu0 0
        %1148 = vmatprep.subr.bf16.mxu0 0
        %1149 = vmatpush1.bf16.msra.mxu0 0
        %1150 = vmatprep.subr.bf16.mxu0 0
        %1151 = vmatpush1.bf16.msra.mxu0 0
        %1152 = vmatprep.subr.bf16.mxu0 0
        %1153 = vmatpush1.bf16.msra.mxu0 0
        %1154 = vmatprep.subr.bf16.mxu0 0
        %1155 = vmatpush1.bf16.msra.mxu0 0
        %1156 = vmatprep.subr.bf16.mxu0 0
        %1157 = vmatpush1.bf16.msra.mxu0 0
        %1158 = vmatprep.subr.bf16.mxu0 0
        %1159 = vmatpush1.bf16.msra.mxu0 0
        %1160 = vmatprep.subr.bf16.mxu0 0
        %1161 = vmatpush1.bf16.msra.mxu0 0
        %1162 = vmatprep.mubr.bf16.mxu0 0
        %1163 = vmatmul.mubr.bf16.gmra.mrb[0].mxu0 %v1125
        %v1164 = vpop.f32.mrb[0].mxu0
        %v1165 = vadd.f32 0.0, %v1164
        %v1166 = vpop.f32.mrb[0].mxu0
        %v1167 = vpop.f32.mrb[0].mxu0
        %v1168 = vpop.f32.mrb[0].mxu0
        %1169 = vdwg.mxu0
        %1171 = vrot.lane.b32.xlu0 %v1165, 24
        %v1172 = vpop.permute.xlu0 %1171
        %vm1174 = vcmask 261312
        %1175 = vst.msk [vmem:[%s419] sm:$0xff] %vm1174, %v1172
        %v1176 = vld [vmem:[%s419] sm:$0xff]
        %v1177 = vpack.c.bf16 %v1176, %v1176
        %v1178 = vld [vmem:[#allocation5] sm:$0xf]
        %v1179 = vld [vmem:[#allocation5 + $0x4] sm:$0xf]
        %v1180 = vld [vmem:[#allocation5 + $0x8] sm:$0xf]
        %v1181 = vld [vmem:[#allocation5 + $0xc] sm:$0xf]
        %v1182 = vld [vmem:[%s9] sm:$0x1]
        %v1184 = vlaneseq
        %v1185 = vshrl.u32 %v1184, 7
        %v1186 = vsub.s32 0, %v1185
        %v1187 = vrot.slane %v1182, %v1186
        %v1193 = vunpack.c.l.b16 %v1178
        %v1194 = vunpack.c.l.b16 %v1179
        %v1195 = vunpack.c.l.b16 %v1180
        %v1196 = vunpack.c.l.b16 %v1181
        %v1197 = vpack.c.b16 %v1194, %v1193
        %v1198 = vpack.c.b16 %v1196, %v1195
        %v1202 = vsel %vm462, %v1177, 0
        %1204 = vmatprep.subr.bf16.mxu0 0
        %1205 = vmatpush1.bf16.msra.mxu0 %v1197
        %1206 = vmatprep.subr.bf16.mxu0 0
        %1207 = vmatpush1.bf16.msra.mxu0 %v1198
        %1208 = vmatprep.subr.bf16.mxu0 0
        %1209 = vmatpush1.bf16.msra.mxu0 0
        %1210 = vmatprep.subr.bf16.mxu0 0
        %1211 = vmatpush1.bf16.msra.mxu0 0
        %1212 = vmatprep.subr.bf16.mxu0 0
        %1213 = vmatpush1.bf16.msra.mxu0 0
        %1214 = vmatprep.subr.bf16.mxu0 0
        %1215 = vmatpush1.bf16.msra.mxu0 0
        %1216 = vmatprep.subr.bf16.mxu0 0
        %1217 = vmatpush1.bf16.msra.mxu0 0
        %1218 = vmatprep.subr.bf16.mxu0 0
        %1219 = vmatpush1.bf16.msra.mxu0 0
        %1220 = vmatprep.subr.bf16.mxu0 0
        %1221 = vmatpush1.bf16.msra.mxu0 0
        %1222 = vmatprep.subr.bf16.mxu0 0
        %1223 = vmatpush1.bf16.msra.mxu0 0
        %1224 = vmatprep.subr.bf16.mxu0 0
        %1225 = vmatpush1.bf16.msra.mxu0 0
        %1226 = vmatprep.subr.bf16.mxu0 0
        %1227 = vmatpush1.bf16.msra.mxu0 0
        %1228 = vmatprep.subr.bf16.mxu0 0
        %1229 = vmatpush1.bf16.msra.mxu0 0
        %1230 = vmatprep.subr.bf16.mxu0 0
        %1231 = vmatpush1.bf16.msra.mxu0 0
        %1232 = vmatprep.subr.bf16.mxu0 0
        %1233 = vmatpush1.bf16.msra.mxu0 0
        %1234 = vmatprep.subr.bf16.mxu0 0
        %1235 = vmatpush1.bf16.msra.mxu0 0
        %1236 = vmatprep.mubr.bf16.mxu0 0
        %1237 = vmatmul.mubr.bf16.gmra.mrb[0].mxu0 %v1202
        %v1238 = vpop.f32.mrb[0].mxu0
        %v1239 = vadd.f32 %v1187, %v1238
        %v1240 = vpop.f32.mrb[0].mxu0
        %v1241 = vpop.f32.mrb[0].mxu0
        %v1242 = vpop.f32.mrb[0].mxu0
        %1243 = vdwg.mxu0
        %1244 = vst.msk [vmem:[%s419] sm:$0xff] %vm462, %v1239
        %s1245 = sand.u32 %s264, 1
        %s1246 = scalar_lea.sflag [#allocation4], %s1245
        %s1247 = sand.u32 %s264, 1
        %s1248 = smul.addr %s1247, 8
        %s1249 = scalar_lea.vmem [#allocation7], %s1248
        // Predicated region
        $region69: #{tpu_custom_call.1} parent=59 // pred_check
          %p1250 = pneg %p274
        $region70: #{tpu_custom_call.1} parent=59 // pred_check_branch
          %1252 = sbr.rel (%p1250) target = $region72
        $region71: #{tpu_custom_call.1} parent=59 // pred_region
          %s1254 = ssub.s32 128, 128
          %1255 = vsyncadd %s1246, %s1254
          %s1256 = smul.addr %s26, 128
          %s1257 = scalar_lea.hbm %s10, %s1256
          %s1259 = sshll.u32 %s1249, 4
          %s1260 = int_to_ptr.vmem [resolvable:$true] %s1259
          %1262 = dma.vmem_to_hbm [thread:$0]  %s1260, 128, %s1257, %s1246
        $region72: #{tpu_custom_call.1} parent=59 // pred_fallthru
          _
      $region60: #{tpu_custom_call.1} parent=5 // pred_fallthru
        _
      %p1263 = scmp.le.s32.totalorder 2, %s21
      // Predicated region
      $region73: #{tpu_custom_call.1} parent=5 // pred_check
        %p1264 = pneg %p1263
      $region74: #{tpu_custom_call.1} parent=5 // pred_check_branch
        %1266 = sbr.rel (%p1264) target = $region76
      $region75: #{tpu_custom_call.1} parent=5 // pred_region
        %s1267 = ssub.s32 %s21, 2
        // Predicated region
        $region77: #{tpu_custom_call.1} parent=75 // pred_check
          %p1268 = pneg %p280
        $region78: #{tpu_custom_call.1} parent=75 // pred_check_branch
          %1270 = sbr.rel (%p1268) target = $region80
        $region79: #{tpu_custom_call.1} parent=75 // pred_region
          %s1271 = sand.u32 %s265, 1
          %s1272 = scalar_lea.sflag [#allocation4], %s1271
          %s1273 = sand.u32 %s265, 1
          %s1274 = smul.addr %s1273, 8
          %s1275 = scalar_lea.vmem [#allocation7], %s1274
          %1276 = dma.done %s1272, 128
        $region80: #{tpu_custom_call.1} parent=75 // pred_fallthru
          _
      $region76: #{tpu_custom_call.1} parent=5 // pred_fallthru
        _
    $region6: #{tpu_custom_call.1} parent=1 // loop_footer
      %s25 = sadd.s32 1, %s21
    $region7: #{tpu_custom_call.1} parent=1 // loop_footer_branch
      %20 = sbr.rel target = $region3
    $region8: #{tpu_custom_call.1} parent=1 // loop_exit
      _
    %1277 = vsyncpa [#allocation3], 1
    %s1278 = scalar_lea.sflag [#allocation3], 1
    %1279 = vsyncpa %s1278, 1
    %1280 = vsyncpa [#allocation6], 1
    %1281 = vsyncpa [#allocation4], 1
    %s1282 = scalar_lea.sflag [#allocation4], 1
    %1283 = vsyncpa %s1282, 1

</llo_original>
